<compile_context>
chip_gen: v7x
topology: tpu7x:2x2x1
jax: 0.10.0
libtpu: 0.0.40
codegen_flags: <defaults>
</compile_context>

<pallas_src>
import functools
import math

import jax
import jax.numpy as jnp
from jax.experimental import pallas as pl
from jax.experimental.pallas import tpu as pltpu

# ---- small, toy config -------------------------------------------------------
BATCH = 2
SEQ = 8
HIDDEN = 32
NUM_HEADS = 4
HEAD_DIM = HIDDEN // NUM_HEADS
LN_EPS = 1e-5              # RobertaConfig default layer_norm_eps
COGVIEW_ALPHA = 32.0
MASK_VALUE = -1e9          # additive "never attend" value (cross-batch pairs)


def _attention_kernel(nh, ht_ref, bias_ref, wqkv_ref, bqkv_ref,
                      wo_ref, bo_ref, gamma_ref, beta_ref, out_ref):
    """Whole (toy) problem in one grid step; all operands live in VMEM.

    ht_ref   : (H, T)       channel-major hidden states, T = B*S
    bias_ref : (nh, T, T)   (rel_pos+rel_2d_pos)/sqrt(Dh) + mask, block-diag
    wqkv_ref : (3H, H)      fused, transposed Q|K|V weights
    """
    hdim, ntok = ht_ref.shape
    dh = hdim // nh
    inv_sqrt_d = 1.0 / math.sqrt(dh)

    h_t = ht_ref[...]                                         # (H, T)

    # --- fused Q/K/V projection (one MXU call), channel-major output ---------
    qkv_t = jnp.dot(wqkv_ref[...], h_t,
                    preferred_element_type=jnp.float32) + bqkv_ref[...]  # (3H, T)

    # Q/K/V and head splits are sublane slices / leading-dim reshapes (free).
    q_r = (qkv_t[:hdim] * inv_sqrt_d).reshape(nh, dh, ntok)   # (nh, Dh, T)
    k_r = qkv_t[hdim:2 * hdim].reshape(nh, dh, ntok)
    v_r = qkv_t[2 * hdim:].reshape(nh, dh, ntok)

    # --- head-batched scores: scores[h,i,j] = sum_d q[h,i,d]*k[h,j,d] --------
    q_hid = jnp.swapaxes(q_r, 1, 2)                           # (nh, T, Dh)
    scores = jnp.einsum("hid,hdj->hij", q_hid, k_r,
                        preferred_element_type=jnp.float32)   # (nh, T, T)
    scores = scores + bias_ref[...]

    # --- softmax (PB-Relax == plain max-subtract for alpha=32 in fp32) -------
    m = jnp.max(scores, axis=-1, keepdims=True)
    e = jnp.exp(scores - m)
    probs = e * pl.reciprocal(jnp.sum(e, axis=-1, keepdims=True), approx=True)

    # --- context: ctx_t[h,d,i] = sum_j v[h,d,j] * probs[h,i,j] ----------------
    ctx_t = jnp.einsum("hdj,hij->hdi", v_r, probs,
                       preferred_element_type=jnp.float32)    # (nh, Dh, T)
    context_t = ctx_t.reshape(hdim, ntok)                     # heads merged, (H, T)

    # --- RobertaSelfOutput: dense + residual + LayerNorm (channel-major) -----
    dense_t = jnp.dot(wo_ref[...], context_t,
                      preferred_element_type=jnp.float32) + bo_ref[...]
    x_t = dense_t + h_t
    mean = jnp.mean(x_t, axis=0, keepdims=True)
    var = jnp.mean((x_t - mean) ** 2, axis=0, keepdims=True)
    y_t = (x_t - mean) * jax.lax.rsqrt(var + LN_EPS)
    y_t = y_t * gamma_ref[...] + beta_ref[...]

    out_ref[...] = jnp.transpose(y_t).astype(out_ref.dtype)   # (T, H) token-major


def layoutlmv3_attention(hidden_states, attention_mask, rel_pos, rel_2d_pos,
                         params):
    B, S, H = hidden_states.shape
    nh = rel_pos.shape[1]
    dh = H // nh
    T = B * S
    inv_sqrt_d = 1.0 / math.sqrt(dh)

    # ----------------- wrapper-side layout plumbing (pure data movement) -----
    h_t = hidden_states.reshape(T, H).T                       # (H, T) channel-major

    wqkv_t = jnp.concatenate(
        [params["wq"].T, params["wk"].T, params["wv"].T], axis=0)        # (3H, H)
    bqkv = jnp.concatenate(
        [params["bq"], params["bk"], params["bv"]], axis=0).reshape(3 * H, 1)

    # Single additive bias: (rel + rel_2d)/sqrt(Dh) + mask, laid out
    # block-diagonally over the folded B*S token axis so one head-batched
    # matmul covers the whole batch; cross-batch pairs get a large negative
    # bias (-> exactly 0 after softmax).
    bias = (rel_pos + rel_2d_pos) * inv_sqrt_d + attention_mask          # (B,nh,S,S)
    bias_full = jnp.full((nh, T, T), MASK_VALUE, jnp.float32)
    for b in range(B):
        bias_full = bias_full.at[:, b * S:(b + 1) * S,
                                 b * S:(b + 1) * S].set(bias[b])

    wo_t = params["wo"].T                                                # (H, H)
    bo = params["bo"].reshape(H, 1)
    gamma = params["gamma"].reshape(H, 1)
    beta = params["beta"].reshape(H, 1)

    zero2 = lambda i: (0, 0)
    zero3 = lambda i: (0, 0, 0)
    in_specs = [
        pl.BlockSpec((H, T), zero2),            # h_t
        pl.BlockSpec((nh, T, T), zero3),        # combined additive bias
        pl.BlockSpec((3 * H, H), zero2),        # fused Wqkv^T
        pl.BlockSpec((3 * H, 1), zero2),        # fused QKV bias
        pl.BlockSpec((H, H), zero2),            # Wo^T
        pl.BlockSpec((H, 1), zero2),            # bo
        pl.BlockSpec((H, 1), zero2),            # LN gamma
        pl.BlockSpec((H, 1), zero2),            # LN beta
    ]

    out = pl.pallas_call(
        functools.partial(_attention_kernel, nh),
        out_shape=jax.ShapeDtypeStruct((T, H), jnp.float32),
        grid_spec=pltpu.PrefetchScalarGridSpec(
            num_scalar_prefetch=0,
            grid=(1,),                          # whole toy problem in one step
            in_specs=in_specs,
            out_specs=pl.BlockSpec((T, H), zero2),
        ),
        compiler_params=pltpu.CompilerParams(
            dimension_semantics=("arbitrary",)),
    )(h_t, bias_full, wqkv_t, bqkv, wo_t, bo, gamma, beta)

    return out.reshape(B, S, H)


# --------------------------- pure-JAX reference --------------------------------
def _reference(hidden_states, attention_mask, rel_pos, rel_2d_pos, params):
    B, S, H = hidden_states.shape
    nh = rel_pos.shape[1]
    dh = H // nh
    q = hidden_states @ params["wq"] + params["bq"]
    k = hidden_states @ params["wk"] + params["bk"]
    v = hidden_states @ params["wv"] + params["bv"]

    def split(x):  # (B,S,H) -> (B,nh,S,Dh)
        return x.reshape(B, S, nh, dh).transpose(0, 2, 1, 3)

    q, k, v = split(q), split(k), split(v)
    inv = 1.0 / math.sqrt(dh)
    scores = jnp.einsum("bhqd,bhkd->bhqk", q * inv, k)
    scores = scores + (rel_pos + rel_2d_pos) * inv
    scores = scores + attention_mask                       # (B,1,1,S) broadcast
    # literal CogView PB-Relax softmax from the PyTorch module
    scaled = scores / COGVIEW_ALPHA
    mx = jnp.max(scaled, axis=-1, keepdims=True)
    probs = jax.nn.softmax((scaled - mx) * COGVIEW_ALPHA, axis=-1)
    ctx = jnp.einsum("bhqk,bhkd->bhqd", probs, v)
    ctx = ctx.transpose(0, 2, 1, 3).reshape(B, S, H)
    dense_out = ctx @ params["wo"] + params["bo"]
    x = dense_out + hidden_states
    mean = jnp.mean(x, axis=-1, keepdims=True)
    var = jnp.mean((x - mean) ** 2, axis=-1, keepdims=True)
    return ((x - mean) * jax.lax.rsqrt(var + LN_EPS)
            * params["gamma"] + params["beta"])


if __name__ == "__main__":
    key = jax.random.PRNGKey(0)
    ks = jax.random.split(key, 12)

    scale = 0.05
    params = {
        "wq": scale * jax.random.normal(ks[0], (HIDDEN, HIDDEN), jnp.float32),
        "bq": scale * jax.random.normal(ks[1], (HIDDEN,), jnp.float32),
        "wk": scale * jax.random.normal(ks[2], (HIDDEN, HIDDEN), jnp.float32),
        "bk": scale * jax.random.normal(ks[3], (HIDDEN,), jnp.float32),
        "wv": scale * jax.random.normal(ks[4], (HIDDEN, HIDDEN), jnp.float32),
        "bv": scale * jax.random.normal(ks[5], (HIDDEN,), jnp.float32),
        "wo": scale * jax.random.normal(ks[6], (HIDDEN, HIDDEN), jnp.float32),
        "bo": scale * jax.random.normal(ks[7], (HIDDEN,), jnp.float32),
        "gamma": jnp.ones((HIDDEN,), jnp.float32),
        "beta": jnp.zeros((HIDDEN,), jnp.float32),
    }

    hidden_states = jax.random.normal(ks[8], (BATCH, SEQ, HIDDEN), jnp.float32)
    rel_pos = 0.1 * jax.random.normal(ks[9], (BATCH, NUM_HEADS, SEQ, SEQ), jnp.float32)
    rel_2d_pos = 0.1 * jax.random.normal(ks[10], (BATCH, NUM_HEADS, SEQ, SEQ), jnp.float32)
    # HF extended additive mask (B,1,1,S): 0 = keep, -1e9 = masked
    mask = jnp.zeros((BATCH, 1, 1, SEQ), jnp.float32)
    mask = mask.at[1, 0, 0, -1].set(-1e9)

    out = layoutlmv3_attention(hidden_states, mask, rel_pos, rel_2d_pos, params)
    out = jax.block_until_ready(out)

    ref = _reference(hidden_states, mask, rel_pos, rel_2d_pos, params)
    assert out.shape == ref.shape
    err = float(jnp.max(jnp.abs(out - ref)))
    # Tolerance loosened slightly vs. fp32-exact because the kernel uses the
    # EUP approximate reciprocal for the softmax denominator.
    assert err < 3e-3, f"mismatch vs reference: max abs err {err:.3e}"

    print("KERNEL_OK")
</pallas_src>

<mosaic_0001>
module attributes {stable_mosaic.version = 11 : i64} {
  func.func @_attention_kernel(%arg0: i32, %arg1: memref<32x16xf32, #tpu.memory_space<vmem>>, %arg2: memref<4x16x16xf32, #tpu.memory_space<vmem>>, %arg3: memref<96x32xf32, #tpu.memory_space<vmem>>, %arg4: memref<96x1xf32, #tpu.memory_space<vmem>>, %arg5: memref<32x32xf32, #tpu.memory_space<vmem>>, %arg6: memref<32x1xf32, #tpu.memory_space<vmem>>, %arg7: memref<32x1xf32, #tpu.memory_space<vmem>>, %arg8: memref<32x1xf32, #tpu.memory_space<vmem>>, %arg9: memref<16x32xf32, #tpu.memory_space<vmem>>) attributes {dimension_semantics = [#tpu.dimension_semantics<arbitrary>], iteration_bounds = array<i64: 1>, scalar_prefetch = 0 : i64, scratch_operands = 0 : i64, tpu.core_type = #tpu.core_type<tc>, window_params = [{pipeline_mode = #tpu.pipeline_mode<synchronous>, transform_indices = @transform_0, window_bounds = array<i64: 32, 16>}, {pipeline_mode = #tpu.pipeline_mode<synchronous>, transform_indices = @transform_1, window_bounds = array<i64: 4, 16, 16>}, {pipeline_mode = #tpu.pipeline_mode<synchronous>, transform_indices = @transform_2, window_bounds = array<i64: 96, 32>}, {pipeline_mode = #tpu.pipeline_mode<synchronous>, transform_indices = @transform_3, window_bounds = array<i64: 96, 1>}, {pipeline_mode = #tpu.pipeline_mode<synchronous>, transform_indices = @transform_4, window_bounds = array<i64: 32, 32>}, {pipeline_mode = #tpu.pipeline_mode<synchronous>, transform_indices = @transform_5, window_bounds = array<i64: 32, 1>}, {pipeline_mode = #tpu.pipeline_mode<synchronous>, transform_indices = @transform_6, window_bounds = array<i64: 32, 1>}, {pipeline_mode = #tpu.pipeline_mode<synchronous>, transform_indices = @transform_7, window_bounds = array<i64: 32, 1>}, {pipeline_mode = #tpu.pipeline_mode<synchronous>, transform_indices = @transform_8, window_bounds = array<i64: 16, 32>}]} {
    %c0 = arith.constant 0 : index
    %c0_0 = arith.constant 0 : index
    %0 = vector.load %arg1[%c0, %c0_0] : memref<32x16xf32, #tpu.memory_space<vmem>>, vector<32x16xf32>
    %c0_1 = arith.constant 0 : index
    %c0_2 = arith.constant 0 : index
    %1 = vector.load %arg3[%c0_1, %c0_2] : memref<96x32xf32, #tpu.memory_space<vmem>>, vector<96x32xf32>
    %cst = arith.constant dense<0.000000e+00> : vector<96x16xf32>
    %2 = tpu.matmul %1, %0, %cst {dimension_numbers = #tpu.dot_dimension_numbers<[1], [0], [0], [1], [0, 0, 1, 1], [], []>} : vector<96x32xf32>, vector<32x16xf32>, vector<96x16xf32> -> vector<96x16xf32>
    %c0_3 = arith.constant 0 : index
    %c0_4 = arith.constant 0 : index
    %3 = vector.load %arg4[%c0_3, %c0_4] : memref<96x1xf32, #tpu.memory_space<vmem>>, vector<96x1xf32>
    %4 = vector.broadcast %3 : vector<96x1xf32> to vector<96x16xf32>
    %5 = arith.addf %2, %4 : vector<96x16xf32>
    %6 = vector.extract_strided_slice %5 {offsets = [0, 0], sizes = [32, 16], strides = [1, 1]} : vector<96x16xf32> to vector<32x16xf32>
    %cst_5 = arith.constant 0.353553385 : f32
    %7 = vector.broadcast %cst_5 : f32 to vector<32x16xf32>
    %8 = arith.mulf %6, %7 : vector<32x16xf32>
    %9 = vector.shape_cast %8 : vector<32x16xf32> to vector<4x8x16xf32>
    %10 = vector.extract_strided_slice %5 {offsets = [32, 0], sizes = [32, 16], strides = [1, 1]} : vector<96x16xf32> to vector<32x16xf32>
    %11 = vector.shape_cast %10 : vector<32x16xf32> to vector<4x8x16xf32>
    %12 = vector.extract_strided_slice %5 {offsets = [64, 0], sizes = [32, 16], strides = [1, 1]} : vector<96x16xf32> to vector<32x16xf32>
    %13 = vector.shape_cast %12 : vector<32x16xf32> to vector<4x8x16xf32>
    %14 = tpu.transpose %9, [0, 2, 1] : vector<4x8x16xf32> -> vector<4x16x8xf32>
    "tpu.trace_start"() <{level = 10 : i32, message = "hid,hdj->hij"}> : () -> ()
    %cst_6 = arith.constant dense<0.000000e+00> : vector<4x16x16xf32>
    %15 = tpu.matmul %14, %11, %cst_6 {dimension_numbers = #tpu.dot_dimension_numbers<[2], [1], [1], [2], [0, 0, 0, 1, 1, 2], [0], [0]>} : vector<4x16x8xf32>, vector<4x8x16xf32>, vector<4x16x16xf32> -> vector<4x16x16xf32>
    "tpu.trace_stop"() : () -> ()
    %c0_7 = arith.constant 0 : index
    %c0_8 = arith.constant 0 : index
    %c0_9 = arith.constant 0 : index
    %16 = vector.load %arg2[%c0_7, %c0_8, %c0_9] : memref<4x16x16xf32, #tpu.memory_space<vmem>>, vector<4x16x16xf32>
    %17 = arith.addf %15, %16 : vector<4x16x16xf32>
    %cst_10 = arith.constant dense<0xFF800000> : vector<4x16xf32>
    %18 = vector.multi_reduction <maximumf>, %17, %cst_10 [2] : vector<4x16x16xf32> to vector<4x16xf32>
    %19 = vector.shape_cast %18 : vector<4x16xf32> to vector<4x16x1xf32>
    %20 = vector.broadcast %19 : vector<4x16x1xf32> to vector<4x16x16xf32>
    %21 = arith.subf %17, %20 : vector<4x16x16xf32>
    %22 = math.exp %21 : vector<4x16x16xf32>
    %cst_11 = arith.constant dense<0.000000e+00> : vector<4x16xf32>
    %23 = vector.multi_reduction <add>, %22, %cst_11 [2] : vector<4x16x16xf32> to vector<4x16xf32>
    %24 = vector.shape_cast %23 : vector<4x16xf32> to vector<4x16x1xf32>
    %25 = tpu.reciprocal %24 {approx = true} : vector<4x16x1xf32> -> vector<4x16x1xf32>
    %26 = vector.broadcast %25 : vector<4x16x1xf32> to vector<4x16x16xf32>
    %27 = arith.mulf %22, %26 : vector<4x16x16xf32>
    "tpu.trace_start"() <{level = 10 : i32, message = "hdj,hij->hdi"}> : () -> ()
    %cst_12 = arith.constant dense<0.000000e+00> : vector<4x8x16xf32>
    %28 = tpu.matmul %13, %27, %cst_12 {dimension_numbers = #tpu.dot_dimension_numbers<[2], [2], [1], [1], [0, 0, 0, 1, 1, 1], [0], [0]>} : vector<4x8x16xf32>, vector<4x16x16xf32>, vector<4x8x16xf32> -> vector<4x8x16xf32>
    "tpu.trace_stop"() : () -> ()
    %29 = vector.shape_cast %28 : vector<4x8x16xf32> to vector<32x16xf32>
    %c0_13 = arith.constant 0 : index
    %c0_14 = arith.constant 0 : index
    %30 = vector.load %arg5[%c0_13, %c0_14] : memref<32x32xf32, #tpu.memory_space<vmem>>, vector<32x32xf32>
    %cst_15 = arith.constant dense<0.000000e+00> : vector<32x16xf32>
    %31 = tpu.matmul %30, %29, %cst_15 {dimension_numbers = #tpu.dot_dimension_numbers<[1], [0], [0], [1], [0, 0, 1, 1], [], []>} : vector<32x32xf32>, vector<32x16xf32>, vector<32x16xf32> -> vector<32x16xf32>
    %c0_16 = arith.constant 0 : index
    %c0_17 = arith.constant 0 : index
    %32 = vector.load %arg6[%c0_16, %c0_17] : memref<32x1xf32, #tpu.memory_space<vmem>>, vector<32x1xf32>
    %33 = vector.broadcast %32 : vector<32x1xf32> to vector<32x16xf32>
    %34 = arith.addf %31, %33 : vector<32x16xf32>
    %35 = arith.addf %34, %0 : vector<32x16xf32>
    %cst_18 = arith.constant dense<0.000000e+00> : vector<16xf32>
    %36 = vector.multi_reduction <add>, %35, %cst_18 [0] : vector<32x16xf32> to vector<16xf32>
    %37 = vector.shape_cast %36 : vector<16xf32> to vector<1x16xf32>
    %cst_19 = arith.constant 3.200000e+01 : f32
    %38 = vector.broadcast %cst_19 : f32 to vector<1x16xf32>
    %39 = arith.divf %37, %38 : vector<1x16xf32>
    %40 = vector.broadcast %39 : vector<1x16xf32> to vector<32x16xf32>
    %41 = arith.subf %35, %40 : vector<32x16xf32>
    %42 = arith.mulf %41, %41 : vector<32x16xf32>
    %cst_20 = arith.constant dense<0.000000e+00> : vector<16xf32>
    %43 = vector.multi_reduction <add>, %42, %cst_20 [0] : vector<32x16xf32> to vector<16xf32>
    %44 = vector.shape_cast %43 : vector<16xf32> to vector<1x16xf32>
    %cst_21 = arith.constant 3.200000e+01 : f32
    %45 = vector.broadcast %cst_21 : f32 to vector<1x16xf32>
    %46 = arith.divf %44, %45 : vector<1x16xf32>
    %47 = vector.broadcast %39 : vector<1x16xf32> to vector<32x16xf32>
    %48 = arith.subf %35, %47 : vector<32x16xf32>
    %cst_22 = arith.constant 9.99999974E-6 : f32
    %49 = vector.broadcast %cst_22 : f32 to vector<1x16xf32>
    %50 = arith.addf %46, %49 : vector<1x16xf32>
    %51 = math.rsqrt %50 : vector<1x16xf32>
    %52 = vector.broadcast %51 : vector<1x16xf32> to vector<32x16xf32>
    %53 = arith.mulf %48, %52 : vector<32x16xf32>
    %c0_23 = arith.constant 0 : index
    %c0_24 = arith.constant 0 : index
    %54 = vector.load %arg7[%c0_23, %c0_24] : memref<32x1xf32, #tpu.memory_space<vmem>>, vector<32x1xf32>
    %55 = vector.broadcast %54 : vector<32x1xf32> to vector<32x16xf32>
    %56 = arith.mulf %53, %55 : vector<32x16xf32>
    %c0_25 = arith.constant 0 : index
    %c0_26 = arith.constant 0 : index
    %57 = vector.load %arg8[%c0_25, %c0_26] : memref<32x1xf32, #tpu.memory_space<vmem>>, vector<32x1xf32>
    %58 = vector.broadcast %57 : vector<32x1xf32> to vector<32x16xf32>
    %59 = arith.addf %56, %58 : vector<32x16xf32>
    %60 = tpu.transpose %59, [1, 0] : vector<32x16xf32> -> vector<16x32xf32>
    %c0_27 = arith.constant 0 : index
    %c0_28 = arith.constant 0 : index
    %61 = vector.load %arg9[%c0_27, %c0_28] : memref<16x32xf32, #tpu.memory_space<vmem>>, vector<16x32xf32>
    tpu.vector_store %arg9[%c0_27, %c0_28], %60 {strides = array<i32>} : memref<16x32xf32, #tpu.memory_space<vmem>>, vector<16x32xf32>,
    return
  }
  func.func @transform_0(%arg0: i32) -> (i32, i32) {
    %c0_i32 = arith.constant 0 : i32
    %c0_i32_0 = arith.constant 0 : i32
    %c0_i32_1 = arith.constant 0 : i32
    return %c0_i32, %c0_i32_0 : i32, i32
  }
  func.func @transform_1(%arg0: i32) -> (i32, i32, i32) {
    %c0_i32 = arith.constant 0 : i32
    %c0_i32_0 = arith.constant 0 : i32
    %c0_i32_1 = arith.constant 0 : i32
    %c0_i32_2 = arith.constant 0 : i32
    return %c0_i32, %c0_i32_0, %c0_i32_1 : i32, i32, i32
  }
  func.func @transform_2(%arg0: i32) -> (i32, i32) {
    %c0_i32 = arith.constant 0 : i32
    %c0_i32_0 = arith.constant 0 : i32
    %c0_i32_1 = arith.constant 0 : i32
    return %c0_i32, %c0_i32_0 : i32, i32
  }
  func.func @transform_3(%arg0: i32) -> (i32, i32) {
    %c0_i32 = arith.constant 0 : i32
    %c0_i32_0 = arith.constant 0 : i32
    %c0_i32_1 = arith.constant 0 : i32
    return %c0_i32, %c0_i32_0 : i32, i32
  }
  func.func @transform_4(%arg0: i32) -> (i32, i32) {
    %c0_i32 = arith.constant 0 : i32
    %c0_i32_0 = arith.constant 0 : i32
    %c0_i32_1 = arith.constant 0 : i32
    return %c0_i32, %c0_i32_0 : i32, i32
  }
  func.func @transform_5(%arg0: i32) -> (i32, i32) {
    %c0_i32 = arith.constant 0 : i32
    %c0_i32_0 = arith.constant 0 : i32
    %c0_i32_1 = arith.constant 0 : i32
    return %c0_i32, %c0_i32_0 : i32, i32
  }
  func.func @transform_6(%arg0: i32) -> (i32, i32) {
    %c0_i32 = arith.constant 0 : i32
    %c0_i32_0 = arith.constant 0 : i32
    %c0_i32_1 = arith.constant 0 : i32
    return %c0_i32, %c0_i32_0 : i32, i32
  }
  func.func @transform_7(%arg0: i32) -> (i32, i32) {
    %c0_i32 = arith.constant 0 : i32
    %c0_i32_0 = arith.constant 0 : i32
    %c0_i32_1 = arith.constant 0 : i32
    return %c0_i32, %c0_i32_0 : i32, i32
  }
  func.func @transform_8(%arg0: i32) -> (i32, i32) {
    %c0_i32 = arith.constant 0 : i32
    %c0_i32_0 = arith.constant 0 : i32
    %c0_i32_1 = arith.constant 0 : i32
    return %c0_i32, %c0_i32_0 : i32, i32
  }
}

</mosaic_0001>

<llo_original>
// kernel: tpu_custom_call.1
$region0: #{tpu_custom_call.1}
  #allocation0 [shape = 'u32[]', space=smem, size = 0x4, offset = 0x4, fixed_abs, tag = 'smem constant byte address 0x4 - core index']
  #allocation1 [shape = 'u32[144,128]{1,0:T(1,128)}', space=vmem, size = 0x12000, scoped, tag = 'internal scratch']
  %s0 = inlined_call_operand.vmem [shape: f32[32,16], index: 0, kind: input, shape index: {}]
  %s1 = inlined_call_operand.vmem [shape: f32[4,16,16], index: 1, kind: input, shape index: {}]
  %s2 = inlined_call_operand.vmem [shape: f32[96,32], index: 2, kind: input, shape index: {}]
  %s3 = inlined_call_operand.vmem [shape: f32[96,1], index: 3, kind: input, shape index: {}]
  %s4 = inlined_call_operand.vmem [shape: f32[32,32], index: 4, kind: input, shape index: {}]
  %s5 = inlined_call_operand.vmem [shape: f32[32,1], index: 5, kind: input, shape index: {}]
  %s6 = inlined_call_operand.vmem [shape: f32[32,1], index: 6, kind: input, shape index: {}]
  %s7 = inlined_call_operand.vmem [shape: f32[32,1], index: 7, kind: input, shape index: {}]
  %s8 = inlined_call_operand.hbm [shape: f32[16,32], index: 8, kind: output, shape index: {}]
  %s9 = sld [smem:[#allocation0]]
  $region42: #{tpu_custom_call.1} parent=0
    _
  %s11 = ssub.s32 1, %s9
  %s12 = scalar_select 0, %s11, %s9
  $region1: #{tpu_custom_call.1} parent=0
    #allocation2 [shape = 'u8[8192]{0}', space=vmem, size = 0x2000, scoped, tag = 'output window, operand 0, single buffered']
    #allocation3 [shape = 's32[1]{0}', space=sflag, size = 0x4, scoped, tag = 'scoped memory for tpu_custom_call.1']
    %13 = vsyncpa [#allocation3], 0
    // Predicated region
    $region2: #{tpu_custom_call.1} parent=1 // pred_check
      _
    $region3: #{tpu_custom_call.1} parent=1 // pred_check_branch
      %15 = sbr.rel (0) target = $region5
    $region4: #{tpu_custom_call.1} parent=1 // pred_region
      _
    $region5: #{tpu_custom_call.1} parent=1 // pred_fallthru
      _
    // Predicated region
    $region6: #{tpu_custom_call.1} parent=1 // pred_check
      _
    $region7: #{tpu_custom_call.1} parent=1 // pred_check_branch
      %17 = sbr.rel (0) target = $region9
    $region8: #{tpu_custom_call.1} parent=1 // pred_region
      _
    $region9: #{tpu_custom_call.1} parent=1 // pred_fallthru
      _
    // Predicated region
    $region10: #{tpu_custom_call.1} parent=1 // pred_check
      _
    $region11: #{tpu_custom_call.1} parent=1 // pred_check_branch
      %19 = sbr.rel (0) target = $region13
    $region12: #{tpu_custom_call.1} parent=1 // pred_region
      _
    $region13: #{tpu_custom_call.1} parent=1 // pred_fallthru
      _
    // Predicated region
    $region14: #{tpu_custom_call.1} parent=1 // pred_check
      _
    $region15: #{tpu_custom_call.1} parent=1 // pred_check_branch
      %21 = sbr.rel (0) target = $region17
    $region16: #{tpu_custom_call.1} parent=1 // pred_region
      _
    $region17: #{tpu_custom_call.1} parent=1 // pred_fallthru
      _
    // Predicated region
    $region18: #{tpu_custom_call.1} parent=1 // pred_check
      _
    $region19: #{tpu_custom_call.1} parent=1 // pred_check_branch
      %23 = sbr.rel (0) target = $region21
    $region20: #{tpu_custom_call.1} parent=1 // pred_region
      _
    $region21: #{tpu_custom_call.1} parent=1 // pred_fallthru
      _
    // Predicated region
    $region22: #{tpu_custom_call.1} parent=1 // pred_check
      _
    $region23: #{tpu_custom_call.1} parent=1 // pred_check_branch
      %25 = sbr.rel (0) target = $region25
    $region24: #{tpu_custom_call.1} parent=1 // pred_region
      _
    $region25: #{tpu_custom_call.1} parent=1 // pred_fallthru
      _
    // Predicated region
    $region26: #{tpu_custom_call.1} parent=1 // pred_check
      _
    $region27: #{tpu_custom_call.1} parent=1 // pred_check_branch
      %27 = sbr.rel (0) target = $region29
    $region28: #{tpu_custom_call.1} parent=1 // pred_region
      _
    $region29: #{tpu_custom_call.1} parent=1 // pred_fallthru
      _
    // Predicated region
    $region30: #{tpu_custom_call.1} parent=1 // pred_check
      _
    $region31: #{tpu_custom_call.1} parent=1 // pred_check_branch
      %29 = sbr.rel (0) target = $region33
    $region32: #{tpu_custom_call.1} parent=1 // pred_region
      _
    $region33: #{tpu_custom_call.1} parent=1 // pred_fallthru
      _
    %v30 = vld [vmem:[%s0] sm:$0xff]
    %v31 = vld [vmem:[%s0 + $0x8] sm:$0xff]
    %v32 = vld [vmem:[%s0 + $0x10] sm:$0xff]
    %v33 = vld [vmem:[%s0 + $0x18] sm:$0xff]
    %v34 = vld [vmem:[%s2] sm:$0xff]
    %v35 = vld [vmem:[%s2 + $0x8] sm:$0xff]
    %v36 = vld [vmem:[%s2 + $0x10] sm:$0xff]
    %v37 = vld [vmem:[%s2 + $0x18] sm:$0xff]
    %v38 = vld [vmem:[%s2 + $0x20] sm:$0xff]
    %v39 = vld [vmem:[%s2 + $0x28] sm:$0xff]
    %v40 = vld [vmem:[%s2 + $0x30] sm:$0xff]
    %v41 = vld [vmem:[%s2 + $0x38] sm:$0xff]
    %v42 = vld [vmem:[%s2 + $0x40] sm:$0xff]
    %v43 = vld [vmem:[%s2 + $0x48] sm:$0xff]
    %v44 = vld [vmem:[%s2 + $0x50] sm:$0xff]
    %v45 = vld [vmem:[%s2 + $0x58] sm:$0xff]
    %v46 = vld [vmem:[%s3] sm:$0xff]
    %v47 = vld [vmem:[%s3 + $0x8] sm:$0xff]
    %v48 = vld [vmem:[%s3 + $0x10] sm:$0xff]
    %v49 = vld [vmem:[%s3 + $0x18] sm:$0xff]
    %v50 = vld [vmem:[%s3 + $0x20] sm:$0xff]
    %v51 = vld [vmem:[%s3 + $0x28] sm:$0xff]
    %v52 = vld [vmem:[%s3 + $0x30] sm:$0xff]
    %v53 = vld [vmem:[%s3 + $0x38] sm:$0xff]
    %v54 = vld [vmem:[%s3 + $0x40] sm:$0xff]
    %v55 = vld [vmem:[%s3 + $0x48] sm:$0xff]
    %v56 = vld [vmem:[%s3 + $0x50] sm:$0xff]
    %v57 = vld [vmem:[%s3 + $0x58] sm:$0xff]
    %59 = vset.pattern.permute.xlu0 0
    %60 = vperm.xlu0 %59, %v46
    %v61 = vpop.permute.xlu0 %60
    %64 = vset.pattern.permute.xlu0 0
    %65 = vperm.xlu0 %64, %v47
    %v66 = vpop.permute.xlu0 %65
    %69 = vset.pattern.permute.xlu0 0
    %70 = vperm.xlu0 %69, %v48
    %v71 = vpop.permute.xlu0 %70
    %74 = vset.pattern.permute.xlu0 0
    %75 = vperm.xlu0 %74, %v49
    %v76 = vpop.permute.xlu0 %75
    %79 = vset.pattern.permute.xlu0 0
    %80 = vperm.xlu0 %79, %v50
    %v81 = vpop.permute.xlu0 %80
    %84 = vset.pattern.permute.xlu0 0
    %85 = vperm.xlu0 %84, %v51
    %v86 = vpop.permute.xlu0 %85
    %89 = vset.pattern.permute.xlu0 0
    %90 = vperm.xlu0 %89, %v52
    %v91 = vpop.permute.xlu0 %90
    %94 = vset.pattern.permute.xlu0 0
    %95 = vperm.xlu0 %94, %v53
    %v96 = vpop.permute.xlu0 %95
    %99 = vset.pattern.permute.xlu0 0
    %100 = vperm.xlu0 %99, %v54
    %v101 = vpop.permute.xlu0 %100
    %104 = vset.pattern.permute.xlu0 0
    %105 = vperm.xlu0 %104, %v55
    %v106 = vpop.permute.xlu0 %105
    %109 = vset.pattern.permute.xlu0 0
    %110 = vperm.xlu0 %109, %v56
    %v111 = vpop.permute.xlu0 %110
    %114 = vset.pattern.permute.xlu0 0
    %115 = vperm.xlu0 %114, %v57
    %v116 = vpop.permute.xlu0 %115
    %vm118 = vcmask 261120
    %v120 = vsel %vm118, %v34, 0
    %v123 = vsel %vm118, %v35, 0
    %v126 = vsel %vm118, %v36, 0
    %v129 = vsel %vm118, %v37, 0
    %v132 = vsel %vm118, %v38, 0
    %v135 = vsel %vm118, %v39, 0
    %v138 = vsel %vm118, %v40, 0
    %v141 = vsel %vm118, %v41, 0
    %v144 = vsel %vm118, %v42, 0
    %v147 = vsel %vm118, %v43, 0
    %v150 = vsel %vm118, %v44, 0
    %v153 = vsel %vm118, %v45, 0
    %155 = vmatprep.subr.mxu0 0.0
    %156 = vmatpush1.msra.mxu0 %v30
    %157 = vmatprep.subr.mxu0 0.0
    %158 = vmatpush1.msra.mxu0 %v31
    %159 = vmatprep.subr.mxu0 0.0
    %160 = vmatpush1.msra.mxu0 %v32
    %161 = vmatprep.subr.mxu0 0.0
    %162 = vmatpush1.msra.mxu0 %v33
    %163 = vmatprep.subr.mxu0 0.0
    %164 = vmatpush1.msra.mxu0 0.0
    %165 = vmatprep.subr.mxu0 0.0
    %166 = vmatpush1.msra.mxu0 0.0
    %167 = vmatprep.subr.mxu0 0.0
    %168 = vmatpush1.msra.mxu0 0.0
    %169 = vmatprep.subr.mxu0 0.0
    %170 = vmatpush1.msra.mxu0 0.0
    %171 = vmatprep.subr.mxu0 0.0
    %172 = vmatpush1.msra.mxu0 0.0
    %173 = vmatprep.subr.mxu0 0.0
    %174 = vmatpush1.msra.mxu0 0.0
    %175 = vmatprep.subr.mxu0 0.0
    %176 = vmatpush1.msra.mxu0 0.0
    %177 = vmatprep.subr.mxu0 0.0
    %178 = vmatpush1.msra.mxu0 0.0
    %179 = vmatprep.subr.mxu0 0.0
    %180 = vmatpush1.msra.mxu0 0.0
    %181 = vmatprep.subr.mxu0 0.0
    %182 = vmatpush1.msra.mxu0 0.0
    %183 = vmatprep.subr.mxu0 0.0
    %184 = vmatpush1.msra.mxu0 0.0
    %185 = vmatprep.subr.mxu0 0.0
    %186 = vmatpush1.msra.mxu0 0.0
    %187 = vmatprep.subr.mxu0 0.0
    %188 = vmatpush1.msra.mxu0 0.0
    %189 = vmatprep.subr.mxu0 0.0
    %190 = vmatpush1.msra.mxu0 0.0
    %191 = vmatprep.subr.mxu0 0.0
    %192 = vmatpush1.msra.mxu0 0.0
    %193 = vmatprep.subr.mxu0 0.0
    %194 = vmatpush1.msra.mxu0 0.0
    %195 = vmatprep.subr.mxu0 0.0
    %196 = vmatpush1.msra.mxu0 0.0
    %197 = vmatprep.subr.mxu0 0.0
    %198 = vmatpush1.msra.mxu0 0.0
    %199 = vmatprep.subr.mxu0 0.0
    %200 = vmatpush1.msra.mxu0 0.0
    %201 = vmatprep.subr.mxu0 0.0
    %202 = vmatpush1.msra.mxu0 0.0
    %203 = vmatprep.subr.mxu0 0.0
    %204 = vmatpush1.msra.mxu0 0.0
    %205 = vmatprep.subr.mxu0 0.0
    %206 = vmatpush1.msra.mxu0 0.0
    %207 = vmatprep.subr.mxu0 0.0
    %208 = vmatpush1.msra.mxu0 0.0
    %209 = vmatprep.subr.mxu0 0.0
    %210 = vmatpush1.msra.mxu0 0.0
    %211 = vmatprep.subr.mxu0 0.0
    %212 = vmatpush1.msra.mxu0 0.0
    %213 = vmatprep.subr.mxu0 0.0
    %214 = vmatpush1.msra.mxu0 0.0
    %215 = vmatprep.subr.mxu0 0.0
    %216 = vmatpush1.msra.mxu0 0.0
    %217 = vmatprep.subr.mxu0 0.0
    %218 = vmatpush1.msra.mxu0 0.0
    %219 = vmatprep.mubr.f32.mxu0 0.0
    %220 = vmatmul.mubr.f32.gmra.mrb[0].mxu0 %v120
    %v221 = vpop.f32.mrb[0].mxu0
    %v222 = vadd.f32 %v61, %v221
    %v223 = vpop.f32.mrb[0].mxu0
    %224 = vmatprep.mubr.f32.mxu0 0.0
    %225 = vmatmul.mubr.f32.gmra.mrb[0].mxu0 %v123
    %v226 = vpop.f32.mrb[0].mxu0
    %v227 = vadd.f32 %v66, %v226
    %v228 = vpop.f32.mrb[0].mxu0
    %229 = vmatprep.mubr.f32.mxu0 0.0
    %230 = vmatmul.mubr.f32.gmra.mrb[0].mxu0 %v126
    %v231 = vpop.f32.mrb[0].mxu0
    %v232 = vadd.f32 %v71, %v231
    %v233 = vpop.f32.mrb[0].mxu0
    %234 = vmatprep.mubr.f32.mxu0 0.0
    %235 = vmatmul.mubr.f32.gmra.mrb[0].mxu0 %v129
    %v236 = vpop.f32.mrb[0].mxu0
    %v237 = vadd.f32 %v76, %v236
    %v238 = vpop.f32.mrb[0].mxu0
    %239 = vmatprep.mubr.f32.mxu0 0.0
    %240 = vmatmul.mubr.f32.gmra.mrb[0].mxu0 %v132
    %v241 = vpop.f32.mrb[0].mxu0
    %v242 = vadd.f32 %v81, %v241
    %v243 = vpop.f32.mrb[0].mxu0
    %244 = vmatprep.mubr.f32.mxu0 0.0
    %245 = vmatmul.mubr.f32.gmra.mrb[0].mxu0 %v135
    %v246 = vpop.f32.mrb[0].mxu0
    %v247 = vadd.f32 %v86, %v246
    %v248 = vpop.f32.mrb[0].mxu0
    %249 = vmatprep.mubr.f32.mxu0 0.0
    %250 = vmatmul.mubr.f32.gmra.mrb[0].mxu0 %v138
    %v251 = vpop.f32.mrb[0].mxu0
    %v252 = vadd.f32 %v91, %v251
    %v253 = vpop.f32.mrb[0].mxu0
    %254 = vmatprep.mubr.f32.mxu0 0.0
    %255 = vmatmul.mubr.f32.gmra.mrb[0].mxu0 %v141
    %v256 = vpop.f32.mrb[0].mxu0
    %v257 = vadd.f32 %v96, %v256
    %v258 = vpop.f32.mrb[0].mxu0
    %259 = vmatprep.mubr.f32.mxu0 0.0
    %260 = vmatmul.mubr.f32.gmra.mrb[0].mxu0 %v144
    %v261 = vpop.f32.mrb[0].mxu0
    %v262 = vadd.f32 %v101, %v261
    %v263 = vpop.f32.mrb[0].mxu0
    %264 = vmatprep.mubr.f32.mxu0 0.0
    %265 = vmatmul.mubr.f32.gmra.mrb[0].mxu0 %v147
    %v266 = vpop.f32.mrb[0].mxu0
    %v267 = vadd.f32 %v106, %v266
    %v268 = vpop.f32.mrb[0].mxu0
    %269 = vmatprep.mubr.f32.mxu0 0.0
    %270 = vmatmul.mubr.f32.gmra.mrb[0].mxu0 %v150
    %v271 = vpop.f32.mrb[0].mxu0
    %v272 = vadd.f32 %v111, %v271
    %v273 = vpop.f32.mrb[0].mxu0
    %274 = vmatprep.mubr.f32.mxu0 0.0
    %275 = vmatmul.mubr.f32.gmra.mrb[0].mxu0 %v153
    %v276 = vpop.f32.mrb[0].mxu0
    %v277 = vadd.f32 %v116, %v276
    %v278 = vpop.f32.mrb[0].mxu0
    %279 = vdwg.mxu0
    %v280 = vmul.f32 %v222, 0.35355338
    %v281 = vmul.f32 %v227, 0.35355338
    %v282 = vmul.f32 %v232, 0.35355338
    %v283 = vmul.f32 %v237, 0.35355338
    %284 = vxpose.xlu0.b32.start [1/16] %v280, 128
    %285 = vxpose.xlu0.b32.cont [2/16] 0.0, 128
    %286 = vxpose.xlu0.b32.cont [3/16] 0.0, 128
    %287 = vxpose.xlu0.b32.cont [4/16] 0.0, 128
    %288 = vxpose.xlu0.b32.cont [5/16] 0.0, 128
    %289 = vxpose.xlu0.b32.cont [6/16] 0.0, 128
    %290 = vxpose.xlu0.b32.cont [7/16] 0.0, 128
    %291 = vxpose.xlu0.b32.cont [8/16] 0.0, 128
    %292 = vxpose.xlu0.b32.cont [9/16] 0.0, 128
    %293 = vxpose.xlu0.b32.cont [10/16] 0.0, 128
    %294 = vxpose.xlu0.b32.cont [11/16] 0.0, 128
    %295 = vxpose.xlu0.b32.cont [12/16] 0.0, 128
    %296 = vxpose.xlu0.b32.cont [13/16] 0.0, 128
    %297 = vxpose.xlu0.b32.cont [14/16] 0.0, 128
    %298 = vxpose.xlu0.b32.cont [15/16] 0.0, 128
    %299 = vxpose.xlu0.b32.end [16/16] 0.0, 128
    %v300 = vpop.trf.xlu0
    %v301 = vpop.trf.xlu0
    %v302 = vpop.trf.xlu0
    %v303 = vpop.trf.xlu0
    %v304 = vpop.trf.xlu0
    %v305 = vpop.trf.xlu0
    %v306 = vpop.trf.xlu0
    %v307 = vpop.trf.xlu0
    %v308 = vpop.trf.xlu0
    %v309 = vpop.trf.xlu0
    %v310 = vpop.trf.xlu0
    %v311 = vpop.trf.xlu0
    %v312 = vpop.trf.xlu0
    %v313 = vpop.trf.xlu0
    %v314 = vpop.trf.xlu0
    %v315 = vpop.trf.xlu0
    %316 = vxpose.xlu0.b32.start [1/16] %v281, 128
    %317 = vxpose.xlu0.b32.cont [2/16] 0.0, 128
    %318 = vxpose.xlu0.b32.cont [3/16] 0.0, 128
    %319 = vxpose.xlu0.b32.cont [4/16] 0.0, 128
    %320 = vxpose.xlu0.b32.cont [5/16] 0.0, 128
    %321 = vxpose.xlu0.b32.cont [6/16] 0.0, 128
    %322 = vxpose.xlu0.b32.cont [7/16] 0.0, 128
    %323 = vxpose.xlu0.b32.cont [8/16] 0.0, 128
    %324 = vxpose.xlu0.b32.cont [9/16] 0.0, 128
    %325 = vxpose.xlu0.b32.cont [10/16] 0.0, 128
    %326 = vxpose.xlu0.b32.cont [11/16] 0.0, 128
    %327 = vxpose.xlu0.b32.cont [12/16] 0.0, 128
    %328 = vxpose.xlu0.b32.cont [13/16] 0.0, 128
    %329 = vxpose.xlu0.b32.cont [14/16] 0.0, 128
    %330 = vxpose.xlu0.b32.cont [15/16] 0.0, 128
    %331 = vxpose.xlu0.b32.end [16/16] 0.0, 128
    %v332 = vpop.trf.xlu0
    %v333 = vpop.trf.xlu0
    %v334 = vpop.trf.xlu0
    %v335 = vpop.trf.xlu0
    %v336 = vpop.trf.xlu0
    %v337 = vpop.trf.xlu0
    %v338 = vpop.trf.xlu0
    %v339 = vpop.trf.xlu0
    %v340 = vpop.trf.xlu0
    %v341 = vpop.trf.xlu0
    %v342 = vpop.trf.xlu0
    %v343 = vpop.trf.xlu0
    %v344 = vpop.trf.xlu0
    %v345 = vpop.trf.xlu0
    %v346 = vpop.trf.xlu0
    %v347 = vpop.trf.xlu0
    %348 = vxpose.xlu0.b32.start [1/16] %v282, 128
    %349 = vxpose.xlu0.b32.cont [2/16] 0.0, 128
    %350 = vxpose.xlu0.b32.cont [3/16] 0.0, 128
    %351 = vxpose.xlu0.b32.cont [4/16] 0.0, 128
    %352 = vxpose.xlu0.b32.cont [5/16] 0.0, 128
    %353 = vxpose.xlu0.b32.cont [6/16] 0.0, 128
    %354 = vxpose.xlu0.b32.cont [7/16] 0.0, 128
    %355 = vxpose.xlu0.b32.cont [8/16] 0.0, 128
    %356 = vxpose.xlu0.b32.cont [9/16] 0.0, 128
    %357 = vxpose.xlu0.b32.cont [10/16] 0.0, 128
    %358 = vxpose.xlu0.b32.cont [11/16] 0.0, 128
    %359 = vxpose.xlu0.b32.cont [12/16] 0.0, 128
    %360 = vxpose.xlu0.b32.cont [13/16] 0.0, 128
    %361 = vxpose.xlu0.b32.cont [14/16] 0.0, 128
    %362 = vxpose.xlu0.b32.cont [15/16] 0.0, 128
    %363 = vxpose.xlu0.b32.end [16/16] 0.0, 128
    %v364 = vpop.trf.xlu0
    %v365 = vpop.trf.xlu0
    %v366 = vpop.trf.xlu0
    %v367 = vpop.trf.xlu0
    %v368 = vpop.trf.xlu0
    %v369 = vpop.trf.xlu0
    %v370 = vpop.trf.xlu0
    %v371 = vpop.trf.xlu0
    %v372 = vpop.trf.xlu0
    %v373 = vpop.trf.xlu0
    %v374 = vpop.trf.xlu0
    %v375 = vpop.trf.xlu0
    %v376 = vpop.trf.xlu0
    %v377 = vpop.trf.xlu0
    %v378 = vpop.trf.xlu0
    %v379 = vpop.trf.xlu0
    %380 = vxpose.xlu0.b32.start [1/16] %v283, 128
    %381 = vxpose.xlu0.b32.cont [2/16] 0.0, 128
    %382 = vxpose.xlu0.b32.cont [3/16] 0.0, 128
    %383 = vxpose.xlu0.b32.cont [4/16] 0.0, 128
    %384 = vxpose.xlu0.b32.cont [5/16] 0.0, 128
    %385 = vxpose.xlu0.b32.cont [6/16] 0.0, 128
    %386 = vxpose.xlu0.b32.cont [7/16] 0.0, 128
    %387 = vxpose.xlu0.b32.cont [8/16] 0.0, 128
    %388 = vxpose.xlu0.b32.cont [9/16] 0.0, 128
    %389 = vxpose.xlu0.b32.cont [10/16] 0.0, 128
    %390 = vxpose.xlu0.b32.cont [11/16] 0.0, 128
    %391 = vxpose.xlu0.b32.cont [12/16] 0.0, 128
    %392 = vxpose.xlu0.b32.cont [13/16] 0.0, 128
    %393 = vxpose.xlu0.b32.cont [14/16] 0.0, 128
    %394 = vxpose.xlu0.b32.cont [15/16] 0.0, 128
    %395 = vxpose.xlu0.b32.end [16/16] 0.0, 128
    %v396 = vpop.trf.xlu0
    %v397 = vpop.trf.xlu0
    %v398 = vpop.trf.xlu0
    %v399 = vpop.trf.xlu0
    %v400 = vpop.trf.xlu0
    %v401 = vpop.trf.xlu0
    %v402 = vpop.trf.xlu0
    %v403 = vpop.trf.xlu0
    %v404 = vpop.trf.xlu0
    %v405 = vpop.trf.xlu0
    %v406 = vpop.trf.xlu0
    %v407 = vpop.trf.xlu0
    %v408 = vpop.trf.xlu0
    %v409 = vpop.trf.xlu0
    %v410 = vpop.trf.xlu0
    %v411 = vpop.trf.xlu0
    %v412 = vld [vmem:[%s1] sm:$0xff]
    %v413 = vld [vmem:[%s1 + $0x8] sm:$0xff]
    %v414 = vld [vmem:[%s1 + $0x10] sm:$0xff]
    %v415 = vld [vmem:[%s1 + $0x18] sm:$0xff]
    %v416 = vld [vmem:[%s1 + $0x20] sm:$0xff]
    %v417 = vld [vmem:[%s1 + $0x28] sm:$0xff]
    %v418 = vld [vmem:[%s1 + $0x30] sm:$0xff]
    %v419 = vld [vmem:[%s1 + $0x38] sm:$0xff]
    %vm420 = vcmask 64512
    %v422 = vsel %vm420, %v300, 0
    %v425 = vsel %vm420, %v301, 0
    %427 = vmatprep.subr.mxu0 0.0
    %428 = vmatpush1.msra.mxu0 %v242
    %429 = vmatprep.subr.mxu0 0.0
    %430 = vmatpush1.msra.mxu0 0.0
    %431 = vmatprep.subr.mxu0 0.0
    %432 = vmatpush1.msra.mxu0 0.0
    %433 = vmatprep.subr.mxu0 0.0
    %434 = vmatpush1.msra.mxu0 0.0
    %435 = vmatprep.subr.mxu0 0.0
    %436 = vmatpush1.msra.mxu0 0.0
    %437 = vmatprep.subr.mxu0 0.0
    %438 = vmatpush1.msra.mxu0 0.0
    %439 = vmatprep.subr.mxu0 0.0
    %440 = vmatpush1.msra.mxu0 0.0
    %441 = vmatprep.subr.mxu0 0.0
    %442 = vmatpush1.msra.mxu0 0.0
    %443 = vmatprep.subr.mxu0 0.0
    %444 = vmatpush1.msra.mxu0 0.0
    %445 = vmatprep.subr.mxu0 0.0
    %446 = vmatpush1.msra.mxu0 0.0
    %447 = vmatprep.subr.mxu0 0.0
    %448 = vmatpush1.msra.mxu0 0.0
    %449 = vmatprep.subr.mxu0 0.0
    %450 = vmatpush1.msra.mxu0 0.0
    %451 = vmatprep.subr.mxu0 0.0
    %452 = vmatpush1.msra.mxu0 0.0
    %453 = vmatprep.subr.mxu0 0.0
    %454 = vmatpush1.msra.mxu0 0.0
    %455 = vmatprep.subr.mxu0 0.0
    %456 = vmatpush1.msra.mxu0 0.0
    %457 = vmatprep.subr.mxu0 0.0
    %458 = vmatpush1.msra.mxu0 0.0
    %459 = vmatprep.subr.mxu0 0.0
    %460 = vmatpush1.msra.mxu0 0.0
    %461 = vmatprep.subr.mxu0 0.0
    %462 = vmatpush1.msra.mxu0 0.0
    %463 = vmatprep.subr.mxu0 0.0
    %464 = vmatpush1.msra.mxu0 0.0
    %465 = vmatprep.subr.mxu0 0.0
    %466 = vmatpush1.msra.mxu0 0.0
    %467 = vmatprep.subr.mxu0 0.0
    %468 = vmatpush1.msra.mxu0 0.0
    %469 = vmatprep.subr.mxu0 0.0
    %470 = vmatpush1.msra.mxu0 0.0
    %471 = vmatprep.subr.mxu0 0.0
    %472 = vmatpush1.msra.mxu0 0.0
    %473 = vmatprep.subr.mxu0 0.0
    %474 = vmatpush1.msra.mxu0 0.0
    %475 = vmatprep.subr.mxu0 0.0
    %476 = vmatpush1.msra.mxu0 0.0
    %477 = vmatprep.subr.mxu0 0.0
    %478 = vmatpush1.msra.mxu0 0.0
    %479 = vmatprep.subr.mxu0 0.0
    %480 = vmatpush1.msra.mxu0 0.0
    %481 = vmatprep.subr.mxu0 0.0
    %482 = vmatpush1.msra.mxu0 0.0
    %483 = vmatprep.subr.mxu0 0.0
    %484 = vmatpush1.msra.mxu0 0.0
    %485 = vmatprep.subr.mxu0 0.0
    %486 = vmatpush1.msra.mxu0 0.0
    %487 = vmatprep.subr.mxu0 0.0
    %488 = vmatpush1.msra.mxu0 0.0
    %489 = vmatprep.subr.mxu0 0.0
    %490 = vmatpush1.msra.mxu0 0.0
    %491 = vmatprep.mubr.f32.mxu0 0.0
    %492 = vmatmul.mubr.f32.gmra.mrb[0].mxu0 %v422
    %v493 = vpop.f32.mrb[0].mxu0
    %v494 = vadd.f32 %v412, %v493
    %v495 = vpop.f32.mrb[0].mxu0
    %496 = vmatprep.mubr.f32.mxu0 0.0
    %497 = vmatmul.mubr.f32.gmra.mrb[0].mxu0 %v425
    %v498 = vpop.f32.mrb[0].mxu0
    %v499 = vadd.f32 %v413, %v498
    %v500 = vpop.f32.mrb[0].mxu0
    %501 = vdwg.mxu0
    %v503 = vsel %vm420, %v332, 0
    %v506 = vsel %vm420, %v333, 0
    %508 = vmatprep.subr.mxu0 0.0
    %509 = vmatpush1.msra.mxu0 %v247
    %510 = vmatprep.subr.mxu0 0.0
    %511 = vmatpush1.msra.mxu0 0.0
    %512 = vmatprep.subr.mxu0 0.0
    %513 = vmatpush1.msra.mxu0 0.0
    %514 = vmatprep.subr.mxu0 0.0
    %515 = vmatpush1.msra.mxu0 0.0
    %516 = vmatprep.subr.mxu0 0.0
    %517 = vmatpush1.msra.mxu0 0.0
    %518 = vmatprep.subr.mxu0 0.0
    %519 = vmatpush1.msra.mxu0 0.0
    %520 = vmatprep.subr.mxu0 0.0
    %521 = vmatpush1.msra.mxu0 0.0
    %522 = vmatprep.subr.mxu0 0.0
    %523 = vmatpush1.msra.mxu0 0.0
    %524 = vmatprep.subr.mxu0 0.0
    %525 = vmatpush1.msra.mxu0 0.0
    %526 = vmatprep.subr.mxu0 0.0
    %527 = vmatpush1.msra.mxu0 0.0
    %528 = vmatprep.subr.mxu0 0.0
    %529 = vmatpush1.msra.mxu0 0.0
    %530 = vmatprep.subr.mxu0 0.0
    %531 = vmatpush1.msra.mxu0 0.0
    %532 = vmatprep.subr.mxu0 0.0
    %533 = vmatpush1.msra.mxu0 0.0
    %534 = vmatprep.subr.mxu0 0.0
    %535 = vmatpush1.msra.mxu0 0.0
    %536 = vmatprep.subr.mxu0 0.0
    %537 = vmatpush1.msra.mxu0 0.0
    %538 = vmatprep.subr.mxu0 0.0
    %539 = vmatpush1.msra.mxu0 0.0
    %540 = vmatprep.subr.mxu0 0.0
    %541 = vmatpush1.msra.mxu0 0.0
    %542 = vmatprep.subr.mxu0 0.0
    %543 = vmatpush1.msra.mxu0 0.0
    %544 = vmatprep.subr.mxu0 0.0
    %545 = vmatpush1.msra.mxu0 0.0
    %546 = vmatprep.subr.mxu0 0.0
    %547 = vmatpush1.msra.mxu0 0.0
    %548 = vmatprep.subr.mxu0 0.0
    %549 = vmatpush1.msra.mxu0 0.0
    %550 = vmatprep.subr.mxu0 0.0
    %551 = vmatpush1.msra.mxu0 0.0
    %552 = vmatprep.subr.mxu0 0.0
    %553 = vmatpush1.msra.mxu0 0.0
    %554 = vmatprep.subr.mxu0 0.0
    %555 = vmatpush1.msra.mxu0 0.0
    %556 = vmatprep.subr.mxu0 0.0
    %557 = vmatpush1.msra.mxu0 0.0
    %558 = vmatprep.subr.mxu0 0.0
    %559 = vmatpush1.msra.mxu0 0.0
    %560 = vmatprep.subr.mxu0 0.0
    %561 = vmatpush1.msra.mxu0 0.0
    %562 = vmatprep.subr.mxu0 0.0
    %563 = vmatpush1.msra.mxu0 0.0
    %564 = vmatprep.subr.mxu0 0.0
    %565 = vmatpush1.msra.mxu0 0.0
    %566 = vmatprep.subr.mxu0 0.0
    %567 = vmatpush1.msra.mxu0 0.0
    %568 = vmatprep.subr.mxu0 0.0
    %569 = vmatpush1.msra.mxu0 0.0
    %570 = vmatprep.subr.mxu0 0.0
    %571 = vmatpush1.msra.mxu0 0.0
    %572 = vmatprep.mubr.f32.mxu0 0.0
    %573 = vmatmul.mubr.f32.gmra.mrb[0].mxu0 %v503
    %v574 = vpop.f32.mrb[0].mxu0
    %v575 = vadd.f32 %v414, %v574
    %v576 = vpop.f32.mrb[0].mxu0
    %577 = vmatprep.mubr.f32.mxu0 0.0
    %578 = vmatmul.mubr.f32.gmra.mrb[0].mxu0 %v506
    %v579 = vpop.f32.mrb[0].mxu0
    %v580 = vadd.f32 %v415, %v579
    %v581 = vpop.f32.mrb[0].mxu0
    %582 = vdwg.mxu0
    %v584 = vsel %vm420, %v364, 0
    %v587 = vsel %vm420, %v365, 0
    %589 = vmatprep.subr.mxu0 0.0
    %590 = vmatpush1.msra.mxu0 %v252
    %591 = vmatprep.subr.mxu0 0.0
    %592 = vmatpush1.msra.mxu0 0.0
    %593 = vmatprep.subr.mxu0 0.0
    %594 = vmatpush1.msra.mxu0 0.0
    %595 = vmatprep.subr.mxu0 0.0
    %596 = vmatpush1.msra.mxu0 0.0
    %597 = vmatprep.subr.mxu0 0.0
    %598 = vmatpush1.msra.mxu0 0.0
    %599 = vmatprep.subr.mxu0 0.0
    %600 = vmatpush1.msra.mxu0 0.0
    %601 = vmatprep.subr.mxu0 0.0
    %602 = vmatpush1.msra.mxu0 0.0
    %603 = vmatprep.subr.mxu0 0.0
    %604 = vmatpush1.msra.mxu0 0.0
    %605 = vmatprep.subr.mxu0 0.0
    %606 = vmatpush1.msra.mxu0 0.0
    %607 = vmatprep.subr.mxu0 0.0
    %608 = vmatpush1.msra.mxu0 0.0
    %609 = vmatprep.subr.mxu0 0.0
    %610 = vmatpush1.msra.mxu0 0.0
    %611 = vmatprep.subr.mxu0 0.0
    %612 = vmatpush1.msra.mxu0 0.0
    %613 = vmatprep.subr.mxu0 0.0
    %614 = vmatpush1.msra.mxu0 0.0
    %615 = vmatprep.subr.mxu0 0.0
    %616 = vmatpush1.msra.mxu0 0.0
    %617 = vmatprep.subr.mxu0 0.0
    %618 = vmatpush1.msra.mxu0 0.0
    %619 = vmatprep.subr.mxu0 0.0
    %620 = vmatpush1.msra.mxu0 0.0
    %621 = vmatprep.subr.mxu0 0.0
    %622 = vmatpush1.msra.mxu0 0.0
    %623 = vmatprep.subr.mxu0 0.0
    %624 = vmatpush1.msra.mxu0 0.0
    %625 = vmatprep.subr.mxu0 0.0
    %626 = vmatpush1.msra.mxu0 0.0
    %627 = vmatprep.subr.mxu0 0.0
    %628 = vmatpush1.msra.mxu0 0.0
    %629 = vmatprep.subr.mxu0 0.0
    %630 = vmatpush1.msra.mxu0 0.0
    %631 = vmatprep.subr.mxu0 0.0
    %632 = vmatpush1.msra.mxu0 0.0
    %633 = vmatprep.subr.mxu0 0.0
    %634 = vmatpush1.msra.mxu0 0.0
    %635 = vmatprep.subr.mxu0 0.0
    %636 = vmatpush1.msra.mxu0 0.0
    %637 = vmatprep.subr.mxu0 0.0
    %638 = vmatpush1.msra.mxu0 0.0
    %639 = vmatprep.subr.mxu0 0.0
    %640 = vmatpush1.msra.mxu0 0.0
    %641 = vmatprep.subr.mxu0 0.0
    %642 = vmatpush1.msra.mxu0 0.0
    %643 = vmatprep.subr.mxu0 0.0
    %644 = vmatpush1.msra.mxu0 0.0
    %645 = vmatprep.subr.mxu0 0.0
    %646 = vmatpush1.msra.mxu0 0.0
    %647 = vmatprep.subr.mxu0 0.0
    %648 = vmatpush1.msra.mxu0 0.0
    %649 = vmatprep.subr.mxu0 0.0
    %650 = vmatpush1.msra.mxu0 0.0
    %651 = vmatprep.subr.mxu0 0.0
    %652 = vmatpush1.msra.mxu0 0.0
    %653 = vmatprep.mubr.f32.mxu0 0.0
    %654 = vmatmul.mubr.f32.gmra.mrb[0].mxu0 %v584
    %v655 = vpop.f32.mrb[0].mxu0
    %v656 = vadd.f32 %v416, %v655
    %v657 = vpop.f32.mrb[0].mxu0
    %658 = vmatprep.mubr.f32.mxu0 0.0
    %659 = vmatmul.mubr.f32.gmra.mrb[0].mxu0 %v587
    %v660 = vpop.f32.mrb[0].mxu0
    %v661 = vadd.f32 %v417, %v660
    %v662 = vpop.f32.mrb[0].mxu0
    %663 = vdwg.mxu0
    %v665 = vsel %vm420, %v396, 0
    %v668 = vsel %vm420, %v397, 0
    %670 = vmatprep.subr.mxu0 0.0
    %671 = vmatpush1.msra.mxu0 %v257
    %672 = vmatprep.subr.mxu0 0.0
    %673 = vmatpush1.msra.mxu0 0.0
    %674 = vmatprep.subr.mxu0 0.0
    %675 = vmatpush1.msra.mxu0 0.0
    %676 = vmatprep.subr.mxu0 0.0
    %677 = vmatpush1.msra.mxu0 0.0
    %678 = vmatprep.subr.mxu0 0.0
    %679 = vmatpush1.msra.mxu0 0.0
    %680 = vmatprep.subr.mxu0 0.0
    %681 = vmatpush1.msra.mxu0 0.0
    %682 = vmatprep.subr.mxu0 0.0
    %683 = vmatpush1.msra.mxu0 0.0
    %684 = vmatprep.subr.mxu0 0.0
    %685 = vmatpush1.msra.mxu0 0.0
    %686 = vmatprep.subr.mxu0 0.0
    %687 = vmatpush1.msra.mxu0 0.0
    %688 = vmatprep.subr.mxu0 0.0
    %689 = vmatpush1.msra.mxu0 0.0
    %690 = vmatprep.subr.mxu0 0.0
    %691 = vmatpush1.msra.mxu0 0.0
    %692 = vmatprep.subr.mxu0 0.0
    %693 = vmatpush1.msra.mxu0 0.0
    %694 = vmatprep.subr.mxu0 0.0
    %695 = vmatpush1.msra.mxu0 0.0
    %696 = vmatprep.subr.mxu0 0.0
    %697 = vmatpush1.msra.mxu0 0.0
    %698 = vmatprep.subr.mxu0 0.0
    %699 = vmatpush1.msra.mxu0 0.0
    %700 = vmatprep.subr.mxu0 0.0
    %701 = vmatpush1.msra.mxu0 0.0
    %702 = vmatprep.subr.mxu0 0.0
    %703 = vmatpush1.msra.mxu0 0.0
    %704 = vmatprep.subr.mxu0 0.0
    %705 = vmatpush1.msra.mxu0 0.0
    %706 = vmatprep.subr.mxu0 0.0
    %707 = vmatpush1.msra.mxu0 0.0
    %708 = vmatprep.subr.mxu0 0.0
    %709 = vmatpush1.msra.mxu0 0.0
    %710 = vmatprep.subr.mxu0 0.0
    %711 = vmatpush1.msra.mxu0 0.0
    %712 = vmatprep.subr.mxu0 0.0
    %713 = vmatpush1.msra.mxu0 0.0
    %714 = vmatprep.subr.mxu0 0.0
    %715 = vmatpush1.msra.mxu0 0.0
    %716 = vmatprep.subr.mxu0 0.0
    %717 = vmatpush1.msra.mxu0 0.0
    %718 = vmatprep.subr.mxu0 0.0
    %719 = vmatpush1.msra.mxu0 0.0
    %720 = vmatprep.subr.mxu0 0.0
    %721 = vmatpush1.msra.mxu0 0.0
    %722 = vmatprep.subr.mxu0 0.0
    %723 = vmatpush1.msra.mxu0 0.0
    %724 = vmatprep.subr.mxu0 0.0
    %725 = vmatpush1.msra.mxu0 0.0
    %726 = vmatprep.subr.mxu0 0.0
    %727 = vmatpush1.msra.mxu0 0.0
    %728 = vmatprep.subr.mxu0 0.0
    %729 = vmatpush1.msra.mxu0 0.0
    %730 = vmatprep.subr.mxu0 0.0
    %731 = vmatpush1.msra.mxu0 0.0
    %732 = vmatprep.subr.mxu0 0.0
    %733 = vmatpush1.msra.mxu0 0.0
    %734 = vmatprep.mubr.f32.mxu0 0.0
    %735 = vmatmul.mubr.f32.gmra.mrb[0].mxu0 %v665
    %v736 = vpop.f32.mrb[0].mxu0
    %v737 = vadd.f32 %v418, %v736
    %v738 = vpop.f32.mrb[0].mxu0
    %739 = vmatprep.mubr.f32.mxu0 0.0
    %740 = vmatmul.mubr.f32.gmra.mrb[0].mxu0 %v668
    %v741 = vpop.f32.mrb[0].mxu0
    %v742 = vadd.f32 %v419, %v741
    %v743 = vpop.f32.mrb[0].mxu0
    %744 = vdwg.mxu0
    %vm745 = vcmask 130048
    %v746 = vsel %vm745, %v494, -inf
    %747 = vmax.xlane.f32.xlu0 %v746
    %v748 = vpop.xlane.xlu0 %747
    %v749 = vsel %vm745, %v499, -inf
    %750 = vmax.xlane.f32.xlu0 %v749
    %v751 = vpop.xlane.xlu0 %750
    %v752 = vsel %vm745, %v575, -inf
    %753 = vmax.xlane.f32.xlu0 %v752
    %v754 = vpop.xlane.xlu0 %753
    %v755 = vsel %vm745, %v580, -inf
    %756 = vmax.xlane.f32.xlu0 %v755
    %v757 = vpop.xlane.xlu0 %756
    %v758 = vsel %vm745, %v656, -inf
    %759 = vmax.xlane.f32.xlu0 %v758
    %v760 = vpop.xlane.xlu0 %759
    %v761 = vsel %vm745, %v661, -inf
    %762 = vmax.xlane.f32.xlu0 %v761
    %v763 = vpop.xlane.xlu0 %762
    %v764 = vsel %vm745, %v737, -inf
    %765 = vmax.xlane.f32.xlu0 %v764
    %v766 = vpop.xlane.xlu0 %765
    %v767 = vsel %vm745, %v742, -inf
    %768 = vmax.xlane.f32.xlu0 %v767
    %v769 = vpop.xlane.xlu0 %768
    %v770 = vsub.f32 %v494, %v748
    %v771 = vsub.f32 %v499, %v751
    %v772 = vsub.f32 %v575, %v754
    %v773 = vsub.f32 %v580, %v757
    %v774 = vsub.f32 %v656, %v760
    %v775 = vsub.f32 %v661, %v763
    %v776 = vsub.f32 %v737, %v766
    %v777 = vsub.f32 %v742, %v769
    %v778 = vmul.f32 %v770, 1.442695
    %v779 = vpow.pop %v778
    %v780 = vmul.f32 %v771, 1.442695
    %v781 = vpow.pop %v780
    %v782 = vmul.f32 %v772, 1.442695
    %v783 = vpow.pop %v782
    %v784 = vmul.f32 %v773, 1.442695
    %v785 = vpow.pop %v784
    %v786 = vmul.f32 %v774, 1.442695
    %v787 = vpow.pop %v786
    %v788 = vmul.f32 %v775, 1.442695
    %v789 = vpow.pop %v788
    %v790 = vmul.f32 %v776, 1.442695
    %v791 = vpow.pop %v790
    %v792 = vmul.f32 %v777, 1.442695
    %v793 = vpow.pop %v792
    %v794 = vsel %vm745, %v779, 0.0
    %795 = vadd.xlane.f32.xlu0 %v794
    %v796 = vpop.xlane.xlu0 %795
    %v797 = vsel %vm745, %v781, 0.0
    %798 = vadd.xlane.f32.xlu0 %v797
    %v799 = vpop.xlane.xlu0 %798
    %v800 = vsel %vm745, %v783, 0.0
    %801 = vadd.xlane.f32.xlu0 %v800
    %v802 = vpop.xlane.xlu0 %801
    %v803 = vsel %vm745, %v785, 0.0
    %804 = vadd.xlane.f32.xlu0 %v803
    %v805 = vpop.xlane.xlu0 %804
    %v806 = vsel %vm745, %v787, 0.0
    %807 = vadd.xlane.f32.xlu0 %v806
    %v808 = vpop.xlane.xlu0 %807
    %v809 = vsel %vm745, %v789, 0.0
    %810 = vadd.xlane.f32.xlu0 %v809
    %v811 = vpop.xlane.xlu0 %810
    %v812 = vsel %vm745, %v791, 0.0
    %813 = vadd.xlane.f32.xlu0 %v812
    %v814 = vpop.xlane.xlu0 %813
    %v815 = vsel %vm745, %v793, 0.0
    %816 = vadd.xlane.f32.xlu0 %v815
    %v817 = vpop.xlane.xlu0 %816
    %v818 = vrcp.pop %v796
    %v819 = vrcp.pop %v799
    %v820 = vrcp.pop %v802
    %v821 = vrcp.pop %v805
    %v822 = vrcp.pop %v808
    %v823 = vrcp.pop %v811
    %v824 = vrcp.pop %v814
    %v825 = vrcp.pop %v817
    %v826 = vmul.f32 %v779, %v818
    %v827 = vmul.f32 %v781, %v819
    %v828 = vmul.f32 %v783, %v820
    %v829 = vmul.f32 %v785, %v821
    %v830 = vmul.f32 %v787, %v822
    %v831 = vmul.f32 %v789, %v823
    %v832 = vmul.f32 %v791, %v824
    %v833 = vmul.f32 %v793, %v825
    %v835 = vsel %vm745, %v262, 0
    %v838 = vsel %vm745, %v826, 0
    %v841 = vsel %vm745, %v827, 0
    %843 = vmatprep.subr.mxu0 0.0
    %844 = vmatpush1.xpose.msra.mxu0 %v838
    %845 = vmatprep.subr.mxu0 0.0
    %846 = vmatpush1.xpose.msra.mxu0 %v841
    %847 = vmatprep.subr.mxu0 0.0
    %848 = vmatpush1.xpose.msra.mxu0 0.0
    %849 = vmatprep.subr.mxu0 0.0
    %850 = vmatpush1.xpose.msra.mxu0 0.0
    %851 = vmatprep.subr.mxu0 0.0
    %852 = vmatpush1.xpose.msra.mxu0 0.0
    %853 = vmatprep.subr.mxu0 0.0
    %854 = vmatpush1.xpose.msra.mxu0 0.0
    %855 = vmatprep.subr.mxu0 0.0
    %856 = vmatpush1.xpose.msra.mxu0 0.0
    %857 = vmatprep.subr.mxu0 0.0
    %858 = vmatpush1.xpose.msra.mxu0 0.0
    %859 = vmatprep.subr.mxu0 0.0
    %860 = vmatpush1.xpose.msra.mxu0 0.0
    %861 = vmatprep.subr.mxu0 0.0
    %862 = vmatpush1.xpose.msra.mxu0 0.0
    %863 = vmatprep.subr.mxu0 0.0
    %864 = vmatpush1.xpose.msra.mxu0 0.0
    %865 = vmatprep.subr.mxu0 0.0
    %866 = vmatpush1.xpose.msra.mxu0 0.0
    %867 = vmatprep.subr.mxu0 0.0
    %868 = vmatpush1.xpose.msra.mxu0 0.0
    %869 = vmatprep.subr.mxu0 0.0
    %870 = vmatpush1.xpose.msra.mxu0 0.0
    %871 = vmatprep.subr.mxu0 0.0
    %872 = vmatpush1.xpose.msra.mxu0 0.0
    %873 = vmatprep.subr.mxu0 0.0
    %874 = vmatpush1.xpose.msra.mxu0 0.0
    %875 = vmatprep.subr.mxu0 0.0
    %876 = vmatpush1.xpose.msra.mxu0 0.0
    %877 = vmatprep.subr.mxu0 0.0
    %878 = vmatpush1.xpose.msra.mxu0 0.0
    %879 = vmatprep.subr.mxu0 0.0
    %880 = vmatpush1.xpose.msra.mxu0 0.0
    %881 = vmatprep.subr.mxu0 0.0
    %882 = vmatpush1.xpose.msra.mxu0 0.0
    %883 = vmatprep.subr.mxu0 0.0
    %884 = vmatpush1.xpose.msra.mxu0 0.0
    %885 = vmatprep.subr.mxu0 0.0
    %886 = vmatpush1.xpose.msra.mxu0 0.0
    %887 = vmatprep.subr.mxu0 0.0
    %888 = vmatpush1.xpose.msra.mxu0 0.0
    %889 = vmatprep.subr.mxu0 0.0
    %890 = vmatpush1.xpose.msra.mxu0 0.0
    %891 = vmatprep.subr.mxu0 0.0
    %892 = vmatpush1.xpose.msra.mxu0 0.0
    %893 = vmatprep.subr.mxu0 0.0
    %894 = vmatpush1.xpose.msra.mxu0 0.0
    %895 = vmatprep.subr.mxu0 0.0
    %896 = vmatpush1.xpose.msra.mxu0 0.0
    %897 = vmatprep.subr.mxu0 0.0
    %898 = vmatpush1.xpose.msra.mxu0 0.0
    %899 = vmatprep.subr.mxu0 0.0
    %900 = vmatpush1.xpose.msra.mxu0 0.0
    %901 = vmatprep.subr.mxu0 0.0
    %902 = vmatpush1.xpose.msra.mxu0 0.0
    %903 = vmatprep.subr.mxu0 0.0
    %904 = vmatpush1.xpose.msra.mxu0 0.0
    %905 = vmatprep.subr.mxu0 0.0
    %906 = vmatpush1.xpose.msra.mxu0 0.0
    %907 = vmatprep.mubr.f32.mxu0 0.0
    %908 = vmatmul.mubr.f32.gmra.mrb[0].mxu0 %v835
    %v909 = vpop.f32.mrb[0].mxu0
    %v910 = vadd.f32 0.0, %v909
    %v911 = vpop.f32.mrb[0].mxu0
    %912 = vdwg.mxu0
    %v914 = vsel %vm745, %v267, 0
    %v917 = vsel %vm745, %v828, 0
    %v920 = vsel %vm745, %v829, 0
    %922 = vmatprep.subr.mxu0 0.0
    %923 = vmatpush1.xpose.msra.mxu0 %v917
    %924 = vmatprep.subr.mxu0 0.0
    %925 = vmatpush1.xpose.msra.mxu0 %v920
    %926 = vmatprep.subr.mxu0 0.0
    %927 = vmatpush1.xpose.msra.mxu0 0.0
    %928 = vmatprep.subr.mxu0 0.0
    %929 = vmatpush1.xpose.msra.mxu0 0.0
    %930 = vmatprep.subr.mxu0 0.0
    %931 = vmatpush1.xpose.msra.mxu0 0.0
    %932 = vmatprep.subr.mxu0 0.0
    %933 = vmatpush1.xpose.msra.mxu0 0.0
    %934 = vmatprep.subr.mxu0 0.0
    %935 = vmatpush1.xpose.msra.mxu0 0.0
    %936 = vmatprep.subr.mxu0 0.0
    %937 = vmatpush1.xpose.msra.mxu0 0.0
    %938 = vmatprep.subr.mxu0 0.0
    %939 = vmatpush1.xpose.msra.mxu0 0.0
    %940 = vmatprep.subr.mxu0 0.0
    %941 = vmatpush1.xpose.msra.mxu0 0.0
    %942 = vmatprep.subr.mxu0 0.0
    %943 = vmatpush1.xpose.msra.mxu0 0.0
    %944 = vmatprep.subr.mxu0 0.0
    %945 = vmatpush1.xpose.msra.mxu0 0.0
    %946 = vmatprep.subr.mxu0 0.0
    %947 = vmatpush1.xpose.msra.mxu0 0.0
    %948 = vmatprep.subr.mxu0 0.0
    %949 = vmatpush1.xpose.msra.mxu0 0.0
    %950 = vmatprep.subr.mxu0 0.0
    %951 = vmatpush1.xpose.msra.mxu0 0.0
    %952 = vmatprep.subr.mxu0 0.0
    %953 = vmatpush1.xpose.msra.mxu0 0.0
    %954 = vmatprep.subr.mxu0 0.0
    %955 = vmatpush1.xpose.msra.mxu0 0.0
    %956 = vmatprep.subr.mxu0 0.0
    %957 = vmatpush1.xpose.msra.mxu0 0.0
    %958 = vmatprep.subr.mxu0 0.0
    %959 = vmatpush1.xpose.msra.mxu0 0.0
    %960 = vmatprep.subr.mxu0 0.0
    %961 = vmatpush1.xpose.msra.mxu0 0.0
    %962 = vmatprep.subr.mxu0 0.0
    %963 = vmatpush1.xpose.msra.mxu0 0.0
    %964 = vmatprep.subr.mxu0 0.0
    %965 = vmatpush1.xpose.msra.mxu0 0.0
    %966 = vmatprep.subr.mxu0 0.0
    %967 = vmatpush1.xpose.msra.mxu0 0.0
    %968 = vmatprep.subr.mxu0 0.0
    %969 = vmatpush1.xpose.msra.mxu0 0.0
    %970 = vmatprep.subr.mxu0 0.0
    %971 = vmatpush1.xpose.msra.mxu0 0.0
    %972 = vmatprep.subr.mxu0 0.0
    %973 = vmatpush1.xpose.msra.mxu0 0.0
    %974 = vmatprep.subr.mxu0 0.0
    %975 = vmatpush1.xpose.msra.mxu0 0.0
    %976 = vmatprep.subr.mxu0 0.0
    %977 = vmatpush1.xpose.msra.mxu0 0.0
    %978 = vmatprep.subr.mxu0 0.0
    %979 = vmatpush1.xpose.msra.mxu0 0.0
    %980 = vmatprep.subr.mxu0 0.0
    %981 = vmatpush1.xpose.msra.mxu0 0.0
    %982 = vmatprep.subr.mxu0 0.0
    %983 = vmatpush1.xpose.msra.mxu0 0.0
    %984 = vmatprep.subr.mxu0 0.0
    %985 = vmatpush1.xpose.msra.mxu0 0.0
    %986 = vmatprep.mubr.f32.mxu0 0.0
    %987 = vmatmul.mubr.f32.gmra.mrb[0].mxu0 %v914
    %v988 = vpop.f32.mrb[0].mxu0
    %v989 = vadd.f32 0.0, %v988
    %v990 = vpop.f32.mrb[0].mxu0
    %991 = vdwg.mxu0
    %v993 = vsel %vm745, %v272, 0
    %v996 = vsel %vm745, %v830, 0
    %v999 = vsel %vm745, %v831, 0
    %1001 = vmatprep.subr.mxu0 0.0
    %1002 = vmatpush1.xpose.msra.mxu0 %v996
    %1003 = vmatprep.subr.mxu0 0.0
    %1004 = vmatpush1.xpose.msra.mxu0 %v999
    %1005 = vmatprep.subr.mxu0 0.0
    %1006 = vmatpush1.xpose.msra.mxu0 0.0
    %1007 = vmatprep.subr.mxu0 0.0
    %1008 = vmatpush1.xpose.msra.mxu0 0.0
    %1009 = vmatprep.subr.mxu0 0.0
    %1010 = vmatpush1.xpose.msra.mxu0 0.0
    %1011 = vmatprep.subr.mxu0 0.0
    %1012 = vmatpush1.xpose.msra.mxu0 0.0
    %1013 = vmatprep.subr.mxu0 0.0
    %1014 = vmatpush1.xpose.msra.mxu0 0.0
    %1015 = vmatprep.subr.mxu0 0.0
    %1016 = vmatpush1.xpose.msra.mxu0 0.0
    %1017 = vmatprep.subr.mxu0 0.0
    %1018 = vmatpush1.xpose.msra.mxu0 0.0
    %1019 = vmatprep.subr.mxu0 0.0
    %1020 = vmatpush1.xpose.msra.mxu0 0.0
    %1021 = vmatprep.subr.mxu0 0.0
    %1022 = vmatpush1.xpose.msra.mxu0 0.0
    %1023 = vmatprep.subr.mxu0 0.0
    %1024 = vmatpush1.xpose.msra.mxu0 0.0
    %1025 = vmatprep.subr.mxu0 0.0
    %1026 = vmatpush1.xpose.msra.mxu0 0.0
    %1027 = vmatprep.subr.mxu0 0.0
    %1028 = vmatpush1.xpose.msra.mxu0 0.0
    %1029 = vmatprep.subr.mxu0 0.0
    %1030 = vmatpush1.xpose.msra.mxu0 0.0
    %1031 = vmatprep.subr.mxu0 0.0
    %1032 = vmatpush1.xpose.msra.mxu0 0.0
    %1033 = vmatprep.subr.mxu0 0.0
    %1034 = vmatpush1.xpose.msra.mxu0 0.0
    %1035 = vmatprep.subr.mxu0 0.0
    %1036 = vmatpush1.xpose.msra.mxu0 0.0
    %1037 = vmatprep.subr.mxu0 0.0
    %1038 = vmatpush1.xpose.msra.mxu0 0.0
    %1039 = vmatprep.subr.mxu0 0.0
    %1040 = vmatpush1.xpose.msra.mxu0 0.0
    %1041 = vmatprep.subr.mxu0 0.0
    %1042 = vmatpush1.xpose.msra.mxu0 0.0
    %1043 = vmatprep.subr.mxu0 0.0
    %1044 = vmatpush1.xpose.msra.mxu0 0.0
    %1045 = vmatprep.subr.mxu0 0.0
    %1046 = vmatpush1.xpose.msra.mxu0 0.0
    %1047 = vmatprep.subr.mxu0 0.0
    %1048 = vmatpush1.xpose.msra.mxu0 0.0
    %1049 = vmatprep.subr.mxu0 0.0
    %1050 = vmatpush1.xpose.msra.mxu0 0.0
    %1051 = vmatprep.subr.mxu0 0.0
    %1052 = vmatpush1.xpose.msra.mxu0 0.0
    %1053 = vmatprep.subr.mxu0 0.0
    %1054 = vmatpush1.xpose.msra.mxu0 0.0
    %1055 = vmatprep.subr.mxu0 0.0
    %1056 = vmatpush1.xpose.msra.mxu0 0.0
    %1057 = vmatprep.subr.mxu0 0.0
    %1058 = vmatpush1.xpose.msra.mxu0 0.0
    %1059 = vmatprep.subr.mxu0 0.0
    %1060 = vmatpush1.xpose.msra.mxu0 0.0
    %1061 = vmatprep.subr.mxu0 0.0
    %1062 = vmatpush1.xpose.msra.mxu0 0.0
    %1063 = vmatprep.subr.mxu0 0.0
    %1064 = vmatpush1.xpose.msra.mxu0 0.0
    %1065 = vmatprep.mubr.f32.mxu0 0.0
    %1066 = vmatmul.mubr.f32.gmra.mrb[0].mxu0 %v993
    %v1067 = vpop.f32.mrb[0].mxu0
    %v1068 = vadd.f32 0.0, %v1067
    %v1069 = vpop.f32.mrb[0].mxu0
    %1070 = vdwg.mxu0
    %v1072 = vsel %vm745, %v277, 0
    %v1075 = vsel %vm745, %v832, 0
    %v1078 = vsel %vm745, %v833, 0
    %1080 = vmatprep.subr.mxu0 0.0
    %1081 = vmatpush1.xpose.msra.mxu0 %v1075
    %1082 = vmatprep.subr.mxu0 0.0
    %1083 = vmatpush1.xpose.msra.mxu0 %v1078
    %1084 = vmatprep.subr.mxu0 0.0
    %1085 = vmatpush1.xpose.msra.mxu0 0.0
    %1086 = vmatprep.subr.mxu0 0.0
    %1087 = vmatpush1.xpose.msra.mxu0 0.0
    %1088 = vmatprep.subr.mxu0 0.0
    %1089 = vmatpush1.xpose.msra.mxu0 0.0
    %1090 = vmatprep.subr.mxu0 0.0
    %1091 = vmatpush1.xpose.msra.mxu0 0.0
    %1092 = vmatprep.subr.mxu0 0.0
    %1093 = vmatpush1.xpose.msra.mxu0 0.0
    %1094 = vmatprep.subr.mxu0 0.0
    %1095 = vmatpush1.xpose.msra.mxu0 0.0
    %1096 = vmatprep.subr.mxu0 0.0
    %1097 = vmatpush1.xpose.msra.mxu0 0.0
    %1098 = vmatprep.subr.mxu0 0.0
    %1099 = vmatpush1.xpose.msra.mxu0 0.0
    %1100 = vmatprep.subr.mxu0 0.0
    %1101 = vmatpush1.xpose.msra.mxu0 0.0
    %1102 = vmatprep.subr.mxu0 0.0
    %1103 = vmatpush1.xpose.msra.mxu0 0.0
    %1104 = vmatprep.subr.mxu0 0.0
    %1105 = vmatpush1.xpose.msra.mxu0 0.0
    %1106 = vmatprep.subr.mxu0 0.0
    %1107 = vmatpush1.xpose.msra.mxu0 0.0
    %1108 = vmatprep.subr.mxu0 0.0
    %1109 = vmatpush1.xpose.msra.mxu0 0.0
    %1110 = vmatprep.subr.mxu0 0.0
    %1111 = vmatpush1.xpose.msra.mxu0 0.0
    %1112 = vmatprep.subr.mxu0 0.0
    %1113 = vmatpush1.xpose.msra.mxu0 0.0
    %1114 = vmatprep.subr.mxu0 0.0
    %1115 = vmatpush1.xpose.msra.mxu0 0.0
    %1116 = vmatprep.subr.mxu0 0.0
    %1117 = vmatpush1.xpose.msra.mxu0 0.0
    %1118 = vmatprep.subr.mxu0 0.0
    %1119 = vmatpush1.xpose.msra.mxu0 0.0
    %1120 = vmatprep.subr.mxu0 0.0
    %1121 = vmatpush1.xpose.msra.mxu0 0.0
    %1122 = vmatprep.subr.mxu0 0.0
    %1123 = vmatpush1.xpose.msra.mxu0 0.0
    %1124 = vmatprep.subr.mxu0 0.0
    %1125 = vmatpush1.xpose.msra.mxu0 0.0
    %1126 = vmatprep.subr.mxu0 0.0
    %1127 = vmatpush1.xpose.msra.mxu0 0.0
    %1128 = vmatprep.subr.mxu0 0.0
    %1129 = vmatpush1.xpose.msra.mxu0 0.0
    %1130 = vmatprep.subr.mxu0 0.0
    %1131 = vmatpush1.xpose.msra.mxu0 0.0
    %1132 = vmatprep.subr.mxu0 0.0
    %1133 = vmatpush1.xpose.msra.mxu0 0.0
    %1134 = vmatprep.subr.mxu0 0.0
    %1135 = vmatpush1.xpose.msra.mxu0 0.0
    %1136 = vmatprep.subr.mxu0 0.0
    %1137 = vmatpush1.xpose.msra.mxu0 0.0
    %1138 = vmatprep.subr.mxu0 0.0
    %1139 = vmatpush1.xpose.msra.mxu0 0.0
    %1140 = vmatprep.subr.mxu0 0.0
    %1141 = vmatpush1.xpose.msra.mxu0 0.0
    %1142 = vmatprep.subr.mxu0 0.0
    %1143 = vmatpush1.xpose.msra.mxu0 0.0
    %1144 = vmatprep.mubr.f32.mxu0 0.0
    %1145 = vmatmul.mubr.f32.gmra.mrb[0].mxu0 %v1072
    %v1146 = vpop.f32.mrb[0].mxu0
    %v1147 = vadd.f32 0.0, %v1146
    %v1148 = vpop.f32.mrb[0].mxu0
    %1149 = vdwg.mxu0
    %v1150 = vld [vmem:[%s4] sm:$0xff]
    %v1151 = vld [vmem:[%s4 + $0x8] sm:$0xff]
    %v1152 = vld [vmem:[%s4 + $0x10] sm:$0xff]
    %v1153 = vld [vmem:[%s4 + $0x18] sm:$0xff]
    %v1154 = vld [vmem:[%s5] sm:$0xff]
    %v1155 = vld [vmem:[%s5 + $0x8] sm:$0xff]
    %v1156 = vld [vmem:[%s5 + $0x10] sm:$0xff]
    %v1157 = vld [vmem:[%s5 + $0x18] sm:$0xff]
    %1159 = vset.pattern.permute.xlu0 0
    %1160 = vperm.xlu0 %1159, %v1154
    %v1161 = vpop.permute.xlu0 %1160
    %1164 = vset.pattern.permute.xlu0 0
    %1165 = vperm.xlu0 %1164, %v1155
    %v1166 = vpop.permute.xlu0 %1165
    %1169 = vset.pattern.permute.xlu0 0
    %1170 = vperm.xlu0 %1169, %v1156
    %v1171 = vpop.permute.xlu0 %1170
    %1174 = vset.pattern.permute.xlu0 0
    %1175 = vperm.xlu0 %1174, %v1157
    %v1176 = vpop.permute.xlu0 %1175
    %v1179 = vsel %vm118, %v1150, 0
    %v1182 = vsel %vm118, %v1151, 0
    %v1185 = vsel %vm118, %v1152, 0
    %v1188 = vsel %vm118, %v1153, 0
    %1190 = vmatprep.subr.mxu0 0.0
    %1191 = vmatpush1.msra.mxu0 %v910
    %1192 = vmatprep.subr.mxu0 0.0
    %1193 = vmatpush1.msra.mxu0 %v989
    %1194 = vmatprep.subr.mxu0 0.0
    %1195 = vmatpush1.msra.mxu0 %v1068
    %1196 = vmatprep.subr.mxu0 0.0
    %1197 = vmatpush1.msra.mxu0 %v1147
    %1198 = vmatprep.subr.mxu0 0.0
    %1199 = vmatpush1.msra.mxu0 0.0
    %1200 = vmatprep.subr.mxu0 0.0
    %1201 = vmatpush1.msra.mxu0 0.0
    %1202 = vmatprep.subr.mxu0 0.0
    %1203 = vmatpush1.msra.mxu0 0.0
    %1204 = vmatprep.subr.mxu0 0.0
    %1205 = vmatpush1.msra.mxu0 0.0
    %1206 = vmatprep.subr.mxu0 0.0
    %1207 = vmatpush1.msra.mxu0 0.0
    %1208 = vmatprep.subr.mxu0 0.0
    %1209 = vmatpush1.msra.mxu0 0.0
    %1210 = vmatprep.subr.mxu0 0.0
    %1211 = vmatpush1.msra.mxu0 0.0
    %1212 = vmatprep.subr.mxu0 0.0
    %1213 = vmatpush1.msra.mxu0 0.0
    %1214 = vmatprep.subr.mxu0 0.0
    %1215 = vmatpush1.msra.mxu0 0.0
    %1216 = vmatprep.subr.mxu0 0.0
    %1217 = vmatpush1.msra.mxu0 0.0
    %1218 = vmatprep.subr.mxu0 0.0
    %1219 = vmatpush1.msra.mxu0 0.0
    %1220 = vmatprep.subr.mxu0 0.0
    %1221 = vmatpush1.msra.mxu0 0.0
    %1222 = vmatprep.subr.mxu0 0.0
    %1223 = vmatpush1.msra.mxu0 0.0
    %1224 = vmatprep.subr.mxu0 0.0
    %1225 = vmatpush1.msra.mxu0 0.0
    %1226 = vmatprep.subr.mxu0 0.0
    %1227 = vmatpush1.msra.mxu0 0.0
    %1228 = vmatprep.subr.mxu0 0.0
    %1229 = vmatpush1.msra.mxu0 0.0
    %1230 = vmatprep.subr.mxu0 0.0
    %1231 = vmatpush1.msra.mxu0 0.0
    %1232 = vmatprep.subr.mxu0 0.0
    %1233 = vmatpush1.msra.mxu0 0.0
    %1234 = vmatprep.subr.mxu0 0.0
    %1235 = vmatpush1.msra.mxu0 0.0
    %1236 = vmatprep.subr.mxu0 0.0
    %1237 = vmatpush1.msra.mxu0 0.0
    %1238 = vmatprep.subr.mxu0 0.0
    %1239 = vmatpush1.msra.mxu0 0.0
    %1240 = vmatprep.subr.mxu0 0.0
    %1241 = vmatpush1.msra.mxu0 0.0
    %1242 = vmatprep.subr.mxu0 0.0
    %1243 = vmatpush1.msra.mxu0 0.0
    %1244 = vmatprep.subr.mxu0 0.0
    %1245 = vmatpush1.msra.mxu0 0.0
    %1246 = vmatprep.subr.mxu0 0.0
    %1247 = vmatpush1.msra.mxu0 0.0
    %1248 = vmatprep.subr.mxu0 0.0
    %1249 = vmatpush1.msra.mxu0 0.0
    %1250 = vmatprep.subr.mxu0 0.0
    %1251 = vmatpush1.msra.mxu0 0.0
    %1252 = vmatprep.subr.mxu0 0.0
    %1253 = vmatpush1.msra.mxu0 0.0
    %1254 = vmatprep.mubr.f32.mxu0 0.0
    %1255 = vmatmul.mubr.f32.gmra.mrb[0].mxu0 %v1179
    %v1256 = vpop.f32.mrb[0].mxu0
    %v1257 = vadd.f32 %v1161, %v1256
    %v1258 = vpop.f32.mrb[0].mxu0
    %1259 = vmatprep.mubr.f32.mxu0 0.0
    %1260 = vmatmul.mubr.f32.gmra.mrb[0].mxu0 %v1182
    %v1261 = vpop.f32.mrb[0].mxu0
    %v1262 = vadd.f32 %v1166, %v1261
    %v1263 = vpop.f32.mrb[0].mxu0
    %1264 = vmatprep.mubr.f32.mxu0 0.0
    %1265 = vmatmul.mubr.f32.gmra.mrb[0].mxu0 %v1185
    %v1266 = vpop.f32.mrb[0].mxu0
    %v1267 = vadd.f32 %v1171, %v1266
    %v1268 = vpop.f32.mrb[0].mxu0
    %1269 = vmatprep.mubr.f32.mxu0 0.0
    %1270 = vmatmul.mubr.f32.gmra.mrb[0].mxu0 %v1188
    %v1271 = vpop.f32.mrb[0].mxu0
    %v1272 = vadd.f32 %v1176, %v1271
    %v1273 = vpop.f32.mrb[0].mxu0
    %1274 = vdwg.mxu0
    %v1275 = vadd.f32 %v1257, %v30
    %v1276 = vadd.f32 %v1262, %v31
    %v1277 = vadd.f32 %v1267, %v32
    %v1278 = vadd.f32 %v1272, %v33
    %v1279 = vsel %vm745, %v1275, 0.0
    %v1280 = vsel %vm745, %v1276, 0.0
    %v1281 = vadd.f32 %v1279, %v1280
    %v1282 = vsel %vm745, %v1277, 0.0
    %v1283 = vadd.f32 %v1281, %v1282
    %v1284 = vsel %vm745, %v1278, 0.0
    %v1285 = vadd.f32 %v1283, %v1284
    %v1286 = vrot.slane %v1285, 4
    %v1287 = vadd.f32 %v1285, %v1286
    %v1288 = vrot.slane %v1287, 2
    %v1289 = vadd.f32 %v1287, %v1288
    %v1290 = vrot.slane %v1289, 1
    %v1291 = vadd.f32 %v1289, %v1290
    %v1292 = vrcp.pop 32.0
    %v1293 = vmul.f32 %v1291, %v1292
    %v1294 = vsub.f32 %v1275, %v1293
    %v1295 = vsub.f32 %v1276, %v1293
    %v1296 = vsub.f32 %v1277, %v1293
    %v1297 = vsub.f32 %v1278, %v1293
    %v1298 = vmul.f32 %v1294, %v1294
    %v1299 = vmul.f32 %v1295, %v1295
    %v1300 = vmul.f32 %v1296, %v1296
    %v1301 = vmul.f32 %v1297, %v1297
    %v1302 = vsel %vm745, %v1298, 0.0
    %v1303 = vsel %vm745, %v1299, 0.0
    %v1304 = vadd.f32 %v1302, %v1303
    %v1305 = vsel %vm745, %v1300, 0.0
    %v1306 = vadd.f32 %v1304, %v1305
    %v1307 = vsel %vm745, %v1301, 0.0
    %v1308 = vadd.f32 %v1306, %v1307
    %v1309 = vrot.slane %v1308, 4
    %v1310 = vadd.f32 %v1308, %v1309
    %v1311 = vrot.slane %v1310, 2
    %v1312 = vadd.f32 %v1310, %v1311
    %v1313 = vrot.slane %v1312, 1
    %v1314 = vadd.f32 %v1312, %v1313
    %v1315 = vmul.f32 %v1314, %v1292
    %v1316 = vadd.f32 %v1315, 1e-05
    %v1317 = vrsqrt.pop %v1316
    %v1318 = vmul.f32 %v1294, %v1317
    %v1319 = vmul.f32 %v1295, %v1317
    %v1320 = vmul.f32 %v1296, %v1317
    %v1321 = vmul.f32 %v1297, %v1317
    %v1322 = vld [vmem:[%s6] sm:$0xff]
    %v1323 = vld [vmem:[%s6 + $0x8] sm:$0xff]
    %v1324 = vld [vmem:[%s6 + $0x10] sm:$0xff]
    %v1325 = vld [vmem:[%s6 + $0x18] sm:$0xff]
    %1327 = vset.pattern.permute.xlu0 0
    %1328 = vperm.xlu0 %1327, %v1322
    %v1329 = vpop.permute.xlu0 %1328
    %1332 = vset.pattern.permute.xlu0 0
    %1333 = vperm.xlu0 %1332, %v1323
    %v1334 = vpop.permute.xlu0 %1333
    %1337 = vset.pattern.permute.xlu0 0
    %1338 = vperm.xlu0 %1337, %v1324
    %v1339 = vpop.permute.xlu0 %1338
    %1342 = vset.pattern.permute.xlu0 0
    %1343 = vperm.xlu0 %1342, %v1325
    %v1344 = vpop.permute.xlu0 %1343
    %v1346 = vmul.f32 %v1318, %v1329
    %v1347 = vmul.f32 %v1319, %v1334
    %v1348 = vmul.f32 %v1320, %v1339
    %v1349 = vmul.f32 %v1321, %v1344
    %v1350 = vld [vmem:[%s7] sm:$0xff]
    %v1351 = vld [vmem:[%s7 + $0x8] sm:$0xff]
    %v1352 = vld [vmem:[%s7 + $0x10] sm:$0xff]
    %v1353 = vld [vmem:[%s7 + $0x18] sm:$0xff]
    %1355 = vset.pattern.permute.xlu0 0
    %1356 = vperm.xlu0 %1355, %v1350
    %v1357 = vpop.permute.xlu0 %1356
    %1360 = vset.pattern.permute.xlu0 0
    %1361 = vperm.xlu0 %1360, %v1351
    %v1362 = vpop.permute.xlu0 %1361
    %1365 = vset.pattern.permute.xlu0 0
    %1366 = vperm.xlu0 %1365, %v1352
    %v1367 = vpop.permute.xlu0 %1366
    %1370 = vset.pattern.permute.xlu0 0
    %1371 = vperm.xlu0 %1370, %v1353
    %v1372 = vpop.permute.xlu0 %1371
    %v1374 = vadd.f32 %v1346, %v1357
    %v1375 = vadd.f32 %v1347, %v1362
    %v1376 = vadd.f32 %v1348, %v1367
    %v1377 = vadd.f32 %v1349, %v1372
    %1378 = vxpose.xlu0.b32.start [1/16] %v1374, 128
    %1379 = vxpose.xlu0.b32.cont [2/16] %v1375, 128
    %1380 = vxpose.xlu0.b32.cont [3/16] %v1376, 128
    %1381 = vxpose.xlu0.b32.cont [4/16] %v1377, 128
    %1382 = vxpose.xlu0.b32.cont [5/16] 0.0, 128
    %1383 = vxpose.xlu0.b32.cont [6/16] 0.0, 128
    %1384 = vxpose.xlu0.b32.cont [7/16] 0.0, 128
    %1385 = vxpose.xlu0.b32.cont [8/16] 0.0, 128
    %1386 = vxpose.xlu0.b32.cont [9/16] 0.0, 128
    %1387 = vxpose.xlu0.b32.cont [10/16] 0.0, 128
    %1388 = vxpose.xlu0.b32.cont [11/16] 0.0, 128
    %1389 = vxpose.xlu0.b32.cont [12/16] 0.0, 128
    %1390 = vxpose.xlu0.b32.cont [13/16] 0.0, 128
    %1391 = vxpose.xlu0.b32.cont [14/16] 0.0, 128
    %1392 = vxpose.xlu0.b32.cont [15/16] 0.0, 128
    %1393 = vxpose.xlu0.b32.end [16/16] 0.0, 128
    %v1394 = vpop.trf.xlu0
    %v1395 = vpop.trf.xlu0
    %v1396 = vpop.trf.xlu0
    %v1397 = vpop.trf.xlu0
    %v1398 = vpop.trf.xlu0
    %v1399 = vpop.trf.xlu0
    %v1400 = vpop.trf.xlu0
    %v1401 = vpop.trf.xlu0
    %v1402 = vpop.trf.xlu0
    %v1403 = vpop.trf.xlu0
    %v1404 = vpop.trf.xlu0
    %v1405 = vpop.trf.xlu0
    %v1406 = vpop.trf.xlu0
    %v1407 = vpop.trf.xlu0
    %v1408 = vpop.trf.xlu0
    %v1409 = vpop.trf.xlu0
    %1410 = vst.msk [vmem:[#allocation2] sm:$0xff] %vm118, %v1394
    %1411 = vst.msk [vmem:[#allocation2 + $0x8] sm:$0xff] %vm118, %v1395
    // Predicated region
    $region34: #{tpu_custom_call.1} parent=1 // pred_check
      _
    $region35: #{tpu_custom_call.1} parent=1 // pred_check_branch
      %1413 = sbr.rel (0) target = $region37
    $region36: #{tpu_custom_call.1} parent=1 // pred_region
      %s1415 = ssub.s32 256, 256
      %1416 = vsyncadd [#allocation3], %s1415
      %s1417 = sshll.u32 [#allocation2], 4
      %s1418 = int_to_ptr.vmem [resolvable:$true] %s1417
      %1423 = dma.vmem_to_hbm [thread:$0]  %s1418, 256, %s8, [#allocation3], 128, 128, 8
    $region37: #{tpu_custom_call.1} parent=1 // pred_fallthru
      _
    // Predicated region
    $region38: #{tpu_custom_call.1} parent=1 // pred_check
      _
    $region39: #{tpu_custom_call.1} parent=1 // pred_check_branch
      %1425 = sbr.rel (0) target = $region41
    $region40: #{tpu_custom_call.1} parent=1 // pred_region
      %1426 = dma.done [#allocation3], 256
    $region41: #{tpu_custom_call.1} parent=1 // pred_fallthru
      _
    %1427 = vsyncpa [#allocation3], 1

</llo_original>
